<compile_context>
chip_gen: v7x
topology: tpu7x:2x2x1
jax: 0.10.0
libtpu: 0.0.40
codegen_flags: <defaults>
</compile_context>

<pallas_src>
import functools

import jax
import jax.numpy as jnp
from jax import lax
from jax.experimental import pallas as pl
from jax.experimental.pallas import tpu as pltpu


# ----------------------------------------------------------------------------
# Fused kernel: expand(1x1)+BN+ReLU6 -> depthwise(3x3)+BN+ReLU6 -> project(1x1)+BN (+res)
# ----------------------------------------------------------------------------
def _fused_ir_kernel(*refs, stride, use_res, has_expand, matmul_dtype):
    if has_expand:
        (x_ref, exp_w_ref, exp_b_ref, dw_w_ref, dw_b_ref,
         proj_w_ref, proj_b_ref, o_ref, hid_ref, acc_ref) = refs
    else:
        (x_ref, dw_w_ref, dw_b_ref,
         proj_w_ref, proj_b_ref, o_ref, hid_ref, acc_ref) = refs
        exp_w_ref = exp_b_ref = None

    f32 = jnp.float32
    H, W, Cin = x_ref.shape
    Ho, Wo, Cout = o_ref.shape
    TC = hid_ref.shape[-1]
    cb = pl.program_id(1)
    n_cb = pl.num_programs(1)

    # ---- expand 1x1 + folded BN + ReLU6, written into a zero-padded VMEM buffer.
    # Border rows/cols of hid_ref stay zero == the depthwise conv's zero padding.
    hid_ref[...] = jnp.zeros_like(hid_ref)
    x = x_ref[...]
    if has_expand:
        lhs = x.reshape(H * W, Cin).astype(matmul_dtype)
        h = jnp.dot(lhs, exp_w_ref[...].astype(matmul_dtype),
                    preferred_element_type=f32)
        h = jnp.clip(h + exp_b_ref[...], 0.0, 6.0)
        hid_ref[1:H + 1, 1:W + 1, :] = h.reshape(H, W, TC)
    else:
        # expand_ratio == 1: depthwise input is x itself (TC == Cin).
        assert TC == Cin
        hid_ref[1:H + 1, 1:W + 1, :] = x.astype(f32)

    # ---- depthwise 3x3 (accumulator initialised with folded-BN bias) + ReLU6 (VPU work, f32)
    wdw = dw_w_ref[...].astype(f32)                                   # (3, 3, TC)
    acc = jnp.broadcast_to(dw_b_ref[...].astype(f32), (Ho, Wo, TC))

    if stride == 1:
        def tap(kh, kw):
            return hid_ref[kh:kh + Ho, kw:kw + Wo, :]
    else:
        # stride 2: split the padded hidden into 4 parity quadrants once (2x2 strided reads),
        # so the 9 taps below are contiguous slices instead of strided sublane loads.
        hq, wq = Ho + 1, Wo + 1
        quad = [[hid_ref[pl.ds(rp, hq, 2), pl.ds(cp, wq, 2), :]
                 for cp in (0, 1)] for rp in (0, 1)]

        def tap(kh, kw):
            q = quad[kh % 2][kw % 2]
            return q[kh // 2:kh // 2 + Ho, kw // 2:kw // 2 + Wo, :]

    for kh in range(3):
        for kw in range(3):
            acc = acc + tap(kh, kw) * wdw[kh, kw, :]
    dw = jnp.clip(acc, 0.0, 6.0)

    # ---- project 1x1 + folded BN (+ residual), accumulated over hidden-channel blocks (MXU)
    p = jnp.dot(dw.reshape(Ho * Wo, TC).astype(matmul_dtype),
                proj_w_ref[...].astype(matmul_dtype),
                preferred_element_type=f32).reshape(Ho, Wo, Cout)

    @pl.when(cb == 0)
    def _init():
        base = jnp.broadcast_to(proj_b_ref[...].astype(f32), (Ho, Wo, Cout))
        if use_res:
            base = base + x.astype(f32)       # use_res => H==Ho, W==Wo, Cin==Cout
        acc_ref[...] = base

    acc_ref[...] = acc_ref[...] + p

    @pl.when(cb == n_cb - 1)
    def _finalize():
        o_ref[...] = acc_ref[...].astype(o_ref.dtype)


# ----------------------------------------------------------------------------
# pallas_call wrapper
# ----------------------------------------------------------------------------
def _pick_hidden_block(chid):
    """Hidden-channel block: whole thing if modest, else a lane-dense divisor."""
    if chid <= 512:
        return chid
    for tc in (512, 384, 256, 128):
        if chid % tc == 0:
            return tc
    return chid


def inverted_residual(x_nchw, params, *, inp, oup, stride, use_bf16_matmul=False):
    """Fused InvertedResidual forward. x_nchw: (N, inp, H, W) -> (N, oup, Ho, Wo)."""
    assert stride in (1, 2)
    use_res = (stride == 1) and (inp == oup)
    n, c, h, w = x_nchw.shape
    assert c == inp
    has_expand = "exp_w" in params
    chid = params["dw_w"].shape[-1]
    ho = (h + 2 - 3) // stride + 1
    wo = (w + 2 - 3) // stride + 1
    tc = _pick_hidden_block(chid)
    if not has_expand:
        assert chid == inp, "expand_ratio == 1 requires hidden == inp"
        tc = chid
    n_cb = chid // tc
    pad_extra = 1 if stride == 2 else 0   # one spare zero row/col for the parity quadrants

    x = jnp.transpose(x_nchw, (0, 2, 3, 1))  # NHWC: channels on the 128-lane axis

    matmul_dtype = jnp.bfloat16 if use_bf16_matmul else x.dtype
    wcast = (lambda a: a.astype(matmul_dtype)) if use_bf16_matmul else (lambda a: a)

    in_specs = [pl.BlockSpec((None, h, w, inp), lambda i, k: (i, 0, 0, 0))]
    args = [x]
    if has_expand:
        in_specs += [
            pl.BlockSpec((inp, tc), lambda i, k: (0, k)),
            pl.BlockSpec((1, tc), lambda i, k: (0, k)),
        ]
        args += [wcast(params["exp_w"]), params["exp_b"].reshape(1, chid)]
    in_specs += [
        pl.BlockSpec((3, 3, tc), lambda i, k: (0, 0, k)),
        pl.BlockSpec((1, 1, tc), lambda i, k: (0, 0, k)),
        pl.BlockSpec((tc, oup), lambda i, k: (k, 0)),
        pl.BlockSpec((1, 1, oup), lambda i, k: (0, 0, 0)),
    ]
    args += [
        params["dw_w"],                        # depthwise weights stay f32 (pure VPU work)
        params["dw_b"].reshape(1, 1, chid),
        wcast(params["proj_w"]),
        params["proj_b"].reshape(1, 1, oup),
    ]

    kernel = functools.partial(
        _fused_ir_kernel, stride=stride, use_res=use_res,
        has_expand=has_expand, matmul_dtype=matmul_dtype)

    out = pl.pallas_call(
        kernel,
        out_shape=jax.ShapeDtypeStruct((n, ho, wo, oup), x.dtype),
        grid=(n, n_cb),
        in_specs=in_specs,
        out_specs=pl.BlockSpec((None, ho, wo, oup), lambda i, k: (i, 0, 0, 0)),
        scratch_shapes=[
            # zero-padded hidden activation (f32) — never leaves VMEM
            pltpu.VMEM((h + 2 + pad_extra, w + 2 + pad_extra, tc), jnp.float32),
            # f32 accumulator for the projection (output-resident across channel blocks)
            pltpu.VMEM((ho, wo, oup), jnp.float32),
        ],
        compiler_params=pltpu.CompilerParams(
            dimension_semantics=("parallel", "arbitrary"),
            # Explicit cap: within the scoped defaults of v5e(16)/v7x(32) with headroom
            # for double-buffered blocks + the hidden scratch at these shapes.
            vmem_limit_bytes=32 * 1024 * 1024,
        ),
    )(*args)
    return jnp.transpose(out, (0, 3, 1, 2))  # back to NCHW


# ----------------------------------------------------------------------------
# Parameter init (deterministic) + BN folding
# ----------------------------------------------------------------------------
_BN_EPS = 1e-5


def _bn_params(key, c):
    k1, k2, k3, k4 = jax.random.split(key, 4)
    gamma = 1.0 + 0.1 * jax.random.normal(k1, (c,), jnp.float32)
    beta = 0.1 * jax.random.normal(k2, (c,), jnp.float32)
    mean = 0.1 * jax.random.normal(k3, (c,), jnp.float32)
    var = jnp.abs(jax.random.normal(k4, (c,), jnp.float32)) + 0.5
    return gamma, beta, mean, var


def _fold(gamma, beta, mean, var):
    scale = gamma / jnp.sqrt(var + _BN_EPS)
    bias = beta - mean * scale
    return scale, bias


def init_params(key, inp, oup, expand_ratio):
    hidden = int(round(inp * expand_ratio))
    ks = jax.random.split(key, 6)
    p = {}
    if expand_ratio != 1:
        # PyTorch conv weight (hidden, inp, 1, 1) -> matmul weight (inp, hidden)
        w = 0.1 * jax.random.normal(ks[0], (inp, hidden), jnp.float32)
        s, b = _fold(*_bn_params(ks[1], hidden))
        p["exp_w"] = w * s[None, :]
        p["exp_b"] = b
    # depthwise weight (hidden, 1, 3, 3) -> (3, 3, hidden)
    wdw = 0.1 * jax.random.normal(ks[2], (3, 3, hidden), jnp.float32)
    s, b = _fold(*_bn_params(ks[3], hidden))
    p["dw_w"] = wdw * s[None, None, :]
    p["dw_b"] = b
    # projection weight (oup, hidden, 1, 1) -> (hidden, oup)
    wpj = 0.1 * jax.random.normal(ks[4], (hidden, oup), jnp.float32)
    s, b = _fold(*_bn_params(ks[5], oup))
    p["proj_w"] = wpj * s[None, :]
    p["proj_b"] = b
    return p, hidden


# ----------------------------------------------------------------------------
# Pure-JAX reference (same folded params) for validation.
# ----------------------------------------------------------------------------
def ref_inverted_residual(x_nchw, params, *, inp, oup, stride):
    use_res = (stride == 1) and (inp == oup)
    x = jnp.transpose(x_nchw, (0, 2, 3, 1))
    y = x
    dn = ("NHWC", "HWIO", "NHWC")
    if "exp_w" in params:
        y = lax.conv_general_dilated(y, params["exp_w"][None, None], (1, 1), "VALID",
                                     dimension_numbers=dn)
        y = jnp.clip(y + params["exp_b"], 0.0, 6.0)
    hid = y.shape[-1]
    y = lax.conv_general_dilated(y, params["dw_w"][:, :, None, :], (stride, stride),
                                 ((1, 1), (1, 1)), dimension_numbers=dn,
                                 feature_group_count=hid)
    y = jnp.clip(y + params["dw_b"], 0.0, 6.0)
    y = lax.conv_general_dilated(y, params["proj_w"][None, None], (1, 1), "VALID",
                                 dimension_numbers=dn)
    y = y + params["proj_b"]
    if use_res:
        y = y + x
    return jnp.transpose(y, (0, 3, 1, 2))


if __name__ == "__main__":
    key = jax.random.PRNGKey(0)
    kx, kp1, kp2 = jax.random.split(key, 3)

    # Config 1: residual path (stride=1, inp==oup, expand_ratio=6).
    inp, oup, stride, expand_ratio = 8, 8, 1, 6
    x = jax.random.normal(kx, (2, inp, 16, 16), jnp.float32)
    params, _ = init_params(kp1, inp, oup, expand_ratio)
    out = jax.block_until_ready(
        inverted_residual(x, params, inp=inp, oup=oup, stride=stride))
    ref = ref_inverted_residual(x, params, inp=inp, oup=oup, stride=stride)
    assert out.shape == (2, oup, 16, 16)
    assert jnp.allclose(out, ref, atol=1e-4, rtol=1e-4), "mismatch (config 1, f32)"

    # Config 2: downsampling path (stride=2, expand_ratio=1, no expand conv).
    inp2, oup2, stride2, expand_ratio2 = 16, 24, 2, 1
    x2 = jax.random.normal(kx, (2, inp2, 16, 16), jnp.float32)
    params2, _ = init_params(kp2, inp2, oup2, expand_ratio2)
    out2 = jax.block_until_ready(
        inverted_residual(x2, params2, inp=inp2, oup=oup2, stride=stride2))
    ref2 = ref_inverted_residual(x2, params2, inp=inp2, oup=oup2, stride=stride2)
    assert out2.shape == (2, oup2, 8, 8)
    assert jnp.allclose(out2, ref2, atol=1e-4, rtol=1e-4), "mismatch (config 2, f32)"

    # Config 1 again on the bf16-MXU fast path (f32 accumulation + f32 epilogue).
    out_bf16 = jax.block_until_ready(
        inverted_residual(x, params, inp=inp, oup=oup, stride=stride,
                          use_bf16_matmul=True))
    assert out_bf16.shape == (2, oup, 16, 16)
    assert jnp.allclose(out_bf16, ref, atol=5e-2, rtol=5e-2), "mismatch (config 1, bf16 MXU)"

    print("KERNEL_OK")
</pallas_src>

<mosaic_0001>
module attributes {stable_mosaic.version = 11 : i64} {
  func.func @_fused_ir_kernel(%arg0: i32, %arg1: i32, %arg2: memref<1x16x16x8xf32, #tpu.memory_space<vmem>>, %arg3: memref<8x48xf32, #tpu.memory_space<vmem>>, %arg4: memref<1x48xf32, #tpu.memory_space<vmem>>, %arg5: memref<3x3x48xf32, #tpu.memory_space<vmem>>, %arg6: memref<1x1x48xf32, #tpu.memory_space<vmem>>, %arg7: memref<48x8xf32, #tpu.memory_space<vmem>>, %arg8: memref<1x1x8xf32, #tpu.memory_space<vmem>>, %arg9: memref<1x16x16x8xf32, #tpu.memory_space<vmem>>, %arg10: memref<18x18x48xf32, #tpu.memory_space<vmem>>, %arg11: memref<16x16x8xf32, #tpu.memory_space<vmem>>) attributes {dimension_semantics = [#tpu.dimension_semantics<parallel>, #tpu.dimension_semantics<arbitrary>], iteration_bounds = array<i64: 2, 1>, scalar_prefetch = 0 : i64, scratch_operands = 2 : i64, tpu.core_type = #tpu.core_type<tc>, window_params = [{transform_indices = @transform_0, window_bounds = array<i64: 1, 16, 16, 8>}, {transform_indices = @transform_1, window_bounds = array<i64: 8, 48>}, {transform_indices = @transform_2, window_bounds = array<i64: 1, 48>}, {transform_indices = @transform_3, window_bounds = array<i64: 3, 3, 48>}, {transform_indices = @transform_4, window_bounds = array<i64: 1, 1, 48>}, {transform_indices = @transform_5, window_bounds = array<i64: 48, 8>}, {pipeline_mode = #tpu.pipeline_mode<synchronous>, transform_indices = @transform_6, window_bounds = array<i64: 1, 1, 8>}, {transform_indices = @transform_7, window_bounds = array<i64: 1, 16, 16, 8>}]} {
    %cst = arith.constant 0.000000e+00 : f32
    %0 = vector.broadcast %cst : f32 to vector<18x18x48xf32>
    %c0 = arith.constant 0 : index
    %c0_0 = arith.constant 0 : index
    %c0_1 = arith.constant 0 : index
    %1 = vector.load %arg10[%c0, %c0_0, %c0_1] : memref<18x18x48xf32, #tpu.memory_space<vmem>>, vector<18x18x48xf32>
    tpu.vector_store %arg10[%c0, %c0_0, %c0_1], %0 {strides = array<i32>} : memref<18x18x48xf32, #tpu.memory_space<vmem>>, vector<18x18x48xf32>,
    %c0_2 = arith.constant 0 : index
    %c0_3 = arith.constant 0 : index
    %c0_4 = arith.constant 0 : index
    %c0_5 = arith.constant 0 : index
    %2 = vector.load %arg2[%c0_2, %c0_3, %c0_4, %c0_5] : memref<1x16x16x8xf32, #tpu.memory_space<vmem>>, vector<1x16x16x8xf32>
    %3 = vector.shape_cast %2 : vector<1x16x16x8xf32> to vector<16x16x8xf32>
    %4 = vector.shape_cast %3 : vector<16x16x8xf32> to vector<256x8xf32>
    %c0_6 = arith.constant 0 : index
    %c0_7 = arith.constant 0 : index
    %5 = vector.load %arg3[%c0_6, %c0_7] : memref<8x48xf32, #tpu.memory_space<vmem>>, vector<8x48xf32>
    %cst_8 = arith.constant dense<0.000000e+00> : vector<256x48xf32>
    %6 = tpu.matmul %4, %5, %cst_8 {dimension_numbers = #tpu.dot_dimension_numbers<[1], [0], [0], [1], [0, 0, 1, 1], [], []>} : vector<256x8xf32>, vector<8x48xf32>, vector<256x48xf32> -> vector<256x48xf32>
    %c0_9 = arith.constant 0 : index
    %c0_10 = arith.constant 0 : index
    %7 = vector.load %arg4[%c0_9, %c0_10] : memref<1x48xf32, #tpu.memory_space<vmem>>, vector<1x48xf32>
    %8 = vector.broadcast %7 : vector<1x48xf32> to vector<256x48xf32>
    %9 = arith.addf %6, %8 : vector<256x48xf32>
    %cst_11 = arith.constant 0.000000e+00 : f32
    %cst_12 = arith.constant 6.000000e+00 : f32
    %10 = vector.broadcast %cst_11 : f32 to vector<256x48xf32>
    %11 = arith.maximumf %10, %9 : vector<256x48xf32>
    %12 = vector.broadcast %cst_12 : f32 to vector<256x48xf32>
    %13 = arith.minimumf %12, %11 : vector<256x48xf32>
    %14 = vector.shape_cast %13 : vector<256x48xf32> to vector<16x16x48xf32>
    %c1 = arith.constant 1 : index
    %c1_13 = arith.constant 1 : index
    %c0_14 = arith.constant 0 : index
    %15 = vector.load %arg10[%c1, %c1_13, %c0_14] : memref<18x18x48xf32, #tpu.memory_space<vmem>>, vector<16x16x48xf32>
    tpu.vector_store %arg10[%c1, %c1_13, %c0_14], %14 {strides = array<i32>} : memref<18x18x48xf32, #tpu.memory_space<vmem>>, vector<16x16x48xf32>,
    %c0_15 = arith.constant 0 : index
    %c0_16 = arith.constant 0 : index
    %c0_17 = arith.constant 0 : index
    %16 = vector.load %arg5[%c0_15, %c0_16, %c0_17] : memref<3x3x48xf32, #tpu.memory_space<vmem>>, vector<3x3x48xf32>
    %c0_18 = arith.constant 0 : index
    %c0_19 = arith.constant 0 : index
    %c0_20 = arith.constant 0 : index
    %17 = vector.load %arg6[%c0_18, %c0_19, %c0_20] : memref<1x1x48xf32, #tpu.memory_space<vmem>>, vector<1x1x48xf32>
    %18 = vector.shape_cast %17 : vector<1x1x48xf32> to vector<1x1x48xf32>
    %19 = vector.broadcast %18 : vector<1x1x48xf32> to vector<16x16x48xf32>
    %c0_21 = arith.constant 0 : index
    %c0_22 = arith.constant 0 : index
    %c0_23 = arith.constant 0 : index
    %20 = vector.load %arg10[%c0_21, %c0_22, %c0_23] : memref<18x18x48xf32, #tpu.memory_space<vmem>>, vector<16x16x48xf32>
    %21 = vector.extract_strided_slice %16 {offsets = [0, 0, 0], sizes = [1, 1, 48], strides = [1, 1, 1]} : vector<3x3x48xf32> to vector<1x1x48xf32>
    %22 = vector.shape_cast %21 : vector<1x1x48xf32> to vector<48xf32>
    %23 = vector.shape_cast %22 : vector<48xf32> to vector<1x1x48xf32>
    %24 = vector.broadcast %23 : vector<1x1x48xf32> to vector<16x16x48xf32>
    %25 = arith.mulf %20, %24 : vector<16x16x48xf32>
    %26 = arith.addf %19, %25 : vector<16x16x48xf32>
    %c0_24 = arith.constant 0 : index
    %c1_25 = arith.constant 1 : index
    %c0_26 = arith.constant 0 : index
    %27 = vector.load %arg10[%c0_24, %c1_25, %c0_26] : memref<18x18x48xf32, #tpu.memory_space<vmem>>, vector<16x16x48xf32>
    %28 = vector.extract_strided_slice %16 {offsets = [0, 1, 0], sizes = [1, 1, 48], strides = [1, 1, 1]} : vector<3x3x48xf32> to vector<1x1x48xf32>
    %29 = vector.shape_cast %28 : vector<1x1x48xf32> to vector<48xf32>
    %30 = vector.shape_cast %29 : vector<48xf32> to vector<1x1x48xf32>
    %31 = vector.broadcast %30 : vector<1x1x48xf32> to vector<16x16x48xf32>
    %32 = arith.mulf %27, %31 : vector<16x16x48xf32>
    %33 = arith.addf %26, %32 : vector<16x16x48xf32>
    %c0_27 = arith.constant 0 : index
    %c2 = arith.constant 2 : index
    %c0_28 = arith.constant 0 : index
    %34 = vector.load %arg10[%c0_27, %c2, %c0_28] : memref<18x18x48xf32, #tpu.memory_space<vmem>>, vector<16x16x48xf32>
    %35 = vector.extract_strided_slice %16 {offsets = [0, 2, 0], sizes = [1, 1, 48], strides = [1, 1, 1]} : vector<3x3x48xf32> to vector<1x1x48xf32>
    %36 = vector.shape_cast %35 : vector<1x1x48xf32> to vector<48xf32>
    %37 = vector.shape_cast %36 : vector<48xf32> to vector<1x1x48xf32>
    %38 = vector.broadcast %37 : vector<1x1x48xf32> to vector<16x16x48xf32>
    %39 = arith.mulf %34, %38 : vector<16x16x48xf32>
    %40 = arith.addf %33, %39 : vector<16x16x48xf32>
    %c1_29 = arith.constant 1 : index
    %c0_30 = arith.constant 0 : index
    %c0_31 = arith.constant 0 : index
    %41 = vector.load %arg10[%c1_29, %c0_30, %c0_31] : memref<18x18x48xf32, #tpu.memory_space<vmem>>, vector<16x16x48xf32>
    %42 = vector.extract_strided_slice %16 {offsets = [1, 0, 0], sizes = [1, 1, 48], strides = [1, 1, 1]} : vector<3x3x48xf32> to vector<1x1x48xf32>
    %43 = vector.shape_cast %42 : vector<1x1x48xf32> to vector<48xf32>
    %44 = vector.shape_cast %43 : vector<48xf32> to vector<1x1x48xf32>
    %45 = vector.broadcast %44 : vector<1x1x48xf32> to vector<16x16x48xf32>
    %46 = arith.mulf %41, %45 : vector<16x16x48xf32>
    %47 = arith.addf %40, %46 : vector<16x16x48xf32>
    %c1_32 = arith.constant 1 : index
    %c1_33 = arith.constant 1 : index
    %c0_34 = arith.constant 0 : index
    %48 = vector.load %arg10[%c1_32, %c1_33, %c0_34] : memref<18x18x48xf32, #tpu.memory_space<vmem>>, vector<16x16x48xf32>
    %49 = vector.extract_strided_slice %16 {offsets = [1, 1, 0], sizes = [1, 1, 48], strides = [1, 1, 1]} : vector<3x3x48xf32> to vector<1x1x48xf32>
    %50 = vector.shape_cast %49 : vector<1x1x48xf32> to vector<48xf32>
    %51 = vector.shape_cast %50 : vector<48xf32> to vector<1x1x48xf32>
    %52 = vector.broadcast %51 : vector<1x1x48xf32> to vector<16x16x48xf32>
    %53 = arith.mulf %48, %52 : vector<16x16x48xf32>
    %54 = arith.addf %47, %53 : vector<16x16x48xf32>
    %c1_35 = arith.constant 1 : index
    %c2_36 = arith.constant 2 : index
    %c0_37 = arith.constant 0 : index
    %55 = vector.load %arg10[%c1_35, %c2_36, %c0_37] : memref<18x18x48xf32, #tpu.memory_space<vmem>>, vector<16x16x48xf32>
    %56 = vector.extract_strided_slice %16 {offsets = [1, 2, 0], sizes = [1, 1, 48], strides = [1, 1, 1]} : vector<3x3x48xf32> to vector<1x1x48xf32>
    %57 = vector.shape_cast %56 : vector<1x1x48xf32> to vector<48xf32>
    %58 = vector.shape_cast %57 : vector<48xf32> to vector<1x1x48xf32>
    %59 = vector.broadcast %58 : vector<1x1x48xf32> to vector<16x16x48xf32>
    %60 = arith.mulf %55, %59 : vector<16x16x48xf32>
    %61 = arith.addf %54, %60 : vector<16x16x48xf32>
    %c2_38 = arith.constant 2 : index
    %c0_39 = arith.constant 0 : index
    %c0_40 = arith.constant 0 : index
    %62 = vector.load %arg10[%c2_38, %c0_39, %c0_40] : memref<18x18x48xf32, #tpu.memory_space<vmem>>, vector<16x16x48xf32>
    %63 = vector.extract_strided_slice %16 {offsets = [2, 0, 0], sizes = [1, 1, 48], strides = [1, 1, 1]} : vector<3x3x48xf32> to vector<1x1x48xf32>
    %64 = vector.shape_cast %63 : vector<1x1x48xf32> to vector<48xf32>
    %65 = vector.shape_cast %64 : vector<48xf32> to vector<1x1x48xf32>
    %66 = vector.broadcast %65 : vector<1x1x48xf32> to vector<16x16x48xf32>
    %67 = arith.mulf %62, %66 : vector<16x16x48xf32>
    %68 = arith.addf %61, %67 : vector<16x16x48xf32>
    %c2_41 = arith.constant 2 : index
    %c1_42 = arith.constant 1 : index
    %c0_43 = arith.constant 0 : index
    %69 = vector.load %arg10[%c2_41, %c1_42, %c0_43] : memref<18x18x48xf32, #tpu.memory_space<vmem>>, vector<16x16x48xf32>
    %70 = vector.extract_strided_slice %16 {offsets = [2, 1, 0], sizes = [1, 1, 48], strides = [1, 1, 1]} : vector<3x3x48xf32> to vector<1x1x48xf32>
    %71 = vector.shape_cast %70 : vector<1x1x48xf32> to vector<48xf32>
    %72 = vector.shape_cast %71 : vector<48xf32> to vector<1x1x48xf32>
    %73 = vector.broadcast %72 : vector<1x1x48xf32> to vector<16x16x48xf32>
    %74 = arith.mulf %69, %73 : vector<16x16x48xf32>
    %75 = arith.addf %68, %74 : vector<16x16x48xf32>
    %c2_44 = arith.constant 2 : index
    %c2_45 = arith.constant 2 : index
    %c0_46 = arith.constant 0 : index
    %76 = vector.load %arg10[%c2_44, %c2_45, %c0_46] : memref<18x18x48xf32, #tpu.memory_space<vmem>>, vector<16x16x48xf32>
    %77 = vector.extract_strided_slice %16 {offsets = [2, 2, 0], sizes = [1, 1, 48], strides = [1, 1, 1]} : vector<3x3x48xf32> to vector<1x1x48xf32>
    %78 = vector.shape_cast %77 : vector<1x1x48xf32> to vector<48xf32>
    %79 = vector.shape_cast %78 : vector<48xf32> to vector<1x1x48xf32>
    %80 = vector.broadcast %79 : vector<1x1x48xf32> to vector<16x16x48xf32>
    %81 = arith.mulf %76, %80 : vector<16x16x48xf32>
    %82 = arith.addf %75, %81 : vector<16x16x48xf32>
    %cst_47 = arith.constant 0.000000e+00 : f32
    %cst_48 = arith.constant 6.000000e+00 : f32
    %83 = vector.broadcast %cst_47 : f32 to vector<16x16x48xf32>
    %84 = arith.maximumf %83, %82 : vector<16x16x48xf32>
    %85 = vector.broadcast %cst_48 : f32 to vector<16x16x48xf32>
    %86 = arith.minimumf %85, %84 : vector<16x16x48xf32>
    %87 = vector.shape_cast %86 : vector<16x16x48xf32> to vector<256x48xf32>
    %c0_49 = arith.constant 0 : index
    %c0_50 = arith.constant 0 : index
    %88 = vector.load %arg7[%c0_49, %c0_50] : memref<48x8xf32, #tpu.memory_space<vmem>>, vector<48x8xf32>
    %cst_51 = arith.constant dense<0.000000e+00> : vector<256x8xf32>
    %89 = tpu.matmul %87, %88, %cst_51 {dimension_numbers = #tpu.dot_dimension_numbers<[1], [0], [0], [1], [0, 0, 1, 1], [], []>} : vector<256x48xf32>, vector<48x8xf32>, vector<256x8xf32> -> vector<256x8xf32>
    %90 = vector.shape_cast %89 : vector<256x8xf32> to vector<16x16x8xf32>
    %c0_i32 = arith.constant 0 : i32
    %91 = arith.cmpi eq, %arg1, %c0_i32 : i32
    %92 = arith.extui %91 : i1 to i32
    %c0_i32_52 = arith.constant 0 : i32
    %93 = arith.cmpi ne, %92, %c0_i32_52 : i32
    scf.if %93 {
      %c0_61 = arith.constant 0 : index
      %c0_62 = arith.constant 0 : index
      %c0_63 = arith.constant 0 : index
      %100 = vector.load %arg8[%c0_61, %c0_62, %c0_63] : memref<1x1x8xf32, #tpu.memory_space<vmem>>, vector<1x1x8xf32>
      %101 = vector.shape_cast %100 : vector<1x1x8xf32> to vector<1x1x8xf32>
      %102 = vector.broadcast %101 : vector<1x1x8xf32> to vector<16x16x8xf32>
      %103 = arith.addf %102, %3 : vector<16x16x8xf32>
      %c0_64 = arith.constant 0 : index
      %c0_65 = arith.constant 0 : index
      %c0_66 = arith.constant 0 : index
      %104 = vector.load %arg11[%c0_64, %c0_65, %c0_66] : memref<16x16x8xf32, #tpu.memory_space<vmem>>, vector<16x16x8xf32>
      tpu.vector_store %arg11[%c0_64, %c0_65, %c0_66], %103 {strides = array<i32>} : memref<16x16x8xf32, #tpu.memory_space<vmem>>, vector<16x16x8xf32>,
    } else {
    }
    %c0_53 = arith.constant 0 : index
    %c0_54 = arith.constant 0 : index
    %c0_55 = arith.constant 0 : index
    %94 = vector.load %arg11[%c0_53, %c0_54, %c0_55] : memref<16x16x8xf32, #tpu.memory_space<vmem>>, vector<16x16x8xf32>
    %95 = arith.addf %94, %90 : vector<16x16x8xf32>
    %c0_56 = arith.constant 0 : index
    %c0_57 = arith.constant 0 : index
    %c0_58 = arith.constant 0 : index
    %96 = vector.load %arg11[%c0_56, %c0_57, %c0_58] : memref<16x16x8xf32, #tpu.memory_space<vmem>>, vector<16x16x8xf32>
    tpu.vector_store %arg11[%c0_56, %c0_57, %c0_58], %95 {strides = array<i32>} : memref<16x16x8xf32, #tpu.memory_space<vmem>>, vector<16x16x8xf32>,
    %c0_i32_59 = arith.constant 0 : i32
    %97 = arith.cmpi eq, %arg1, %c0_i32_59 : i32
    %98 = arith.extui %97 : i1 to i32
    %c0_i32_60 = arith.constant 0 : i32
    %99 = arith.cmpi ne, %98, %c0_i32_60 : i32
    scf.if %99 {
      %c0_61 = arith.constant 0 : index
      %c0_62 = arith.constant 0 : index
      %c0_63 = arith.constant 0 : index
      %100 = vector.load %arg11[%c0_61, %c0_62, %c0_63] : memref<16x16x8xf32, #tpu.memory_space<vmem>>, vector<16x16x8xf32>
      %c0_64 = arith.constant 0 : index
      %c0_65 = arith.constant 0 : index
      %c0_66 = arith.constant 0 : index
      %c0_67 = arith.constant 0 : index
      %101 = vector.load %arg9[%c0_64, %c0_65, %c0_66, %c0_67] : memref<1x16x16x8xf32, #tpu.memory_space<vmem>>, vector<1x16x16x8xf32>
      %102 = vector.shape_cast %101 : vector<1x16x16x8xf32> to vector<16x16x8xf32>
      %103 = vector.shape_cast %100 : vector<16x16x8xf32> to vector<1x16x16x8xf32>
      tpu.vector_store %arg9[%c0_64, %c0_65, %c0_66, %c0_67], %103 {strides = array<i32>} : memref<1x16x16x8xf32, #tpu.memory_space<vmem>>, vector<1x16x16x8xf32>,
    } else {
    }
    return
  }
  func.func @transform_0(%arg0: i32, %arg1: i32) -> (i32, i32, i32, i32) {
    %c0_i32 = arith.constant 0 : i32
    %c0_i32_0 = arith.constant 0 : i32
    %c0_i32_1 = arith.constant 0 : i32
    %c0_i32_2 = arith.constant 0 : i32
    return %arg0, %c0_i32, %c0_i32_0, %c0_i32_1 : i32, i32, i32, i32
  }
  func.func @transform_1(%arg0: i32, %arg1: i32) -> (i32, i32) {
    %c0_i32 = arith.constant 0 : i32
    %c0_i32_0 = arith.constant 0 : i32
    return %c0_i32, %arg1 : i32, i32
  }
  func.func @transform_2(%arg0: i32, %arg1: i32) -> (i32, i32) {
    %c0_i32 = arith.constant 0 : i32
    %c0_i32_0 = arith.constant 0 : i32
    return %c0_i32, %arg1 : i32, i32
  }
  func.func @transform_3(%arg0: i32, %arg1: i32) -> (i32, i32, i32) {
    %c0_i32 = arith.constant 0 : i32
    %c0_i32_0 = arith.constant 0 : i32
    %c0_i32_1 = arith.constant 0 : i32
    return %c0_i32, %c0_i32_0, %arg1 : i32, i32, i32
  }
  func.func @transform_4(%arg0: i32, %arg1: i32) -> (i32, i32, i32) {
    %c0_i32 = arith.constant 0 : i32
    %c0_i32_0 = arith.constant 0 : i32
    %c0_i32_1 = arith.constant 0 : i32
    return %c0_i32, %c0_i32_0, %arg1 : i32, i32, i32
  }
  func.func @transform_5(%arg0: i32, %arg1: i32) -> (i32, i32) {
    %c0_i32 = arith.constant 0 : i32
    %c0_i32_0 = arith.constant 0 : i32
    return %arg1, %c0_i32 : i32, i32
  }
  func.func @transform_6(%arg0: i32, %arg1: i32) -> (i32, i32, i32) {
    %c0_i32 = arith.constant 0 : i32
    %c0_i32_0 = arith.constant 0 : i32
    %c0_i32_1 = arith.constant 0 : i32
    %c0_i32_2 = arith.constant 0 : i32
    return %c0_i32, %c0_i32_0, %c0_i32_1 : i32, i32, i32
  }
  func.func @transform_7(%arg0: i32, %arg1: i32) -> (i32, i32, i32, i32) {
    %c0_i32 = arith.constant 0 : i32
    %c0_i32_0 = arith.constant 0 : i32
    %c0_i32_1 = arith.constant 0 : i32
    %c0_i32_2 = arith.constant 0 : i32
    return %arg0, %c0_i32, %c0_i32_0, %c0_i32_1 : i32, i32, i32, i32
  }
}

</mosaic_0001>

<llo_original>
// kernel: tpu_custom_call.1
$region0: #{tpu_custom_call.1}
  #allocation0 [shape = 'u32[]', space=smem, size = 0x4, offset = 0x4, fixed_abs, tag = 'smem constant byte address 0x4 - core index']
  #allocation1 [shape = 'u32[144,128]{1,0:T(1,128)}', space=vmem, size = 0x12000, scoped, tag = 'internal scratch']
  #allocation2 [shape = 'f32[18,18,48]{2,1,0:T(8,128)}', space=vmem, size = 0x36000, scoped, tag = 'scratch operand']
  #allocation3 [shape = 'f32[16,16,8]{2,1,0:T(8,128)}', space=vmem, size = 0x20000, scoped, tag = 'scratch operand']
  %s0 = inlined_call_operand.vmem [shape: f32[2,16,16,8], index: 0, kind: input, shape index: {}]
  %s1 = inlined_call_operand.vmem [shape: f32[8,48], index: 1, kind: input, shape index: {}]
  %s2 = inlined_call_operand.vmem [shape: f32[1,48], index: 2, kind: input, shape index: {}]
  %s3 = inlined_call_operand.vmem [shape: f32[3,3,48], index: 3, kind: input, shape index: {}]
  %s4 = inlined_call_operand.vmem [shape: f32[1,1,48], index: 4, kind: input, shape index: {}]
  %s5 = inlined_call_operand.vmem [shape: f32[48,8], index: 5, kind: input, shape index: {}]
  %s6 = inlined_call_operand.vmem [shape: f32[1,1,8], index: 6, kind: input, shape index: {}]
  %s7 = inlined_call_operand.vmem [shape: f32[2,16,16,8], index: 7, kind: output, shape index: {}]
  %s8 = sld [smem:[#allocation0]]
  $region69: #{tpu_custom_call.1} parent=0
    _
  %s10 = ssub.s32 1, %s8
  %s11 = scalar_select 0, %s10, %s8
  loop: start=0, step=1, limit=4
  $region2: #{tpu_custom_call.1} parent=0 // loop_pre_header
    _
  $region3: #{tpu_custom_call.1} parent=0 // loop_header
    %s13 = sphi 0, %s17
    %p14 = scmp.ge.s32.totalorder %s13, 4
    %s20 = sphi 0, %s32
    %s21 = sphi 0, %s28
    %s22 = sphi 0, %s20
    %s23 = sphi 0, %s21
    %s24 = sphi 0, %s22
    %s25 = sphi 0, %s23
    %s35 = sphi 0, %s37
    %s38 = sphi 0, %s35
    %s39 = sphi 0, %s38
    %s55 = sphi 0, %s39
    %s61 = sphi 0, %s63
    %s64 = sphi 0, %s61
    %s65 = sphi 0, %s64
    %s81 = sphi 0, %s65
    %s87 = sphi 0, %s89
    %s90 = sphi 0, %s87
    %s91 = sphi 0, %s90
    %s107 = sphi 0, %s91
    %s113 = sphi 0, %s115
    %s116 = sphi 0, %s113
    %s117 = sphi 0, %s116
    %s133 = sphi 0, %s117
    %s139 = sphi 0, %s141
    %s142 = sphi 0, %s139
    %s143 = sphi 0, %s142
    %s159 = sphi 0, %s143
    %s165 = sphi 0, %s167
    %s168 = sphi 0, %s165
    %s169 = sphi 0, %s168
    %s185 = sphi 0, %s169
    %s189 = sphi 0, %s189
    %s191 = sphi 0, %s189
    %s192 = sphi 0, %s191
    %s206 = sphi 0, %s192
    %s212 = sphi 0, %s214
    %s215 = sphi 0, %s212
    %s216 = sphi 0, %s215
    %s232 = sphi 0, %s216
  $region4: #{tpu_custom_call.1} parent=0 // loop_header_branch
    %16 = sbr.rel (%p14) target = $region8
  $region5: #{tpu_custom_call.1} parent=0 // loop_body
    %s18 = ssub.s32 %s13, 1
    %s19 = ssub.s32 %s13, 2
    %s26 = sadd.s32 1, %s21
    %p27 = scmp.ge.s32.totalorder %s26, 1
    %s28 = scalar_select %p27, 0, %s26
    %s29 = sadd.s32 1, %s20
    %s30 = scalar_select %p27, %s29, %s20
    %p31 = scmp.ge.s32.totalorder %s30, 2
    %s32 = scalar_select %p31, 0, %s30
    %s33 = ssub.s32 %s20, %s32
    %p34 = scmp.eq.s32.totalorder %s33, 0
    %s36 = sadd.s32 %s35, 1
    %s37 = scalar_select %p34, %s35, %s36
    %p40 = pneg %p34
    %p41 = scmp.eq.s32.totalorder %s13, 1
    %p42 = por %p40, %p41
    %p43 = scmp.ne.s32.totalorder %s35, %s38
    %p44 = scmp.eq.s32.totalorder %s13, 0
    %p45 = por %p43, %p44
    %p46 = scmp.ne.s32.totalorder %s35, %s38
    %p47 = scmp.eq.s32.totalorder %s18, 1
    %p48 = por %p46, %p47
    %p49 = scmp.ne.s32.totalorder %s38, %s39
    %p50 = scmp.eq.s32.totalorder %s18, 0
    %p51 = por %p49, %p50
    %p52 = scmp.ne.s32.totalorder %s38, %s39
    %p53 = scmp.eq.s32.totalorder %s19, 1
    %p54 = por %p52, %p53
    %p56 = scmp.ne.s32.totalorder %s39, %s55
    %p57 = scmp.eq.s32.totalorder %s19, 0
    %p58 = por %p56, %p57
    %s59 = ssub.s32 %s21, %s28
    %p60 = scmp.eq.s32.totalorder %s59, 0
    %s62 = sadd.s32 %s61, 1
    %s63 = scalar_select %p60, %s61, %s62
    %p66 = pneg %p60
    %p67 = scmp.eq.s32.totalorder %s13, 1
    %p68 = por %p66, %p67
    %p69 = scmp.ne.s32.totalorder %s61, %s64
    %p70 = scmp.eq.s32.totalorder %s13, 0
    %p71 = por %p69, %p70
    %p72 = scmp.ne.s32.totalorder %s61, %s64
    %p73 = scmp.eq.s32.totalorder %s18, 1
    %p74 = por %p72, %p73
    %p75 = scmp.ne.s32.totalorder %s64, %s65
    %p76 = scmp.eq.s32.totalorder %s18, 0
    %p77 = por %p75, %p76
    %p78 = scmp.ne.s32.totalorder %s64, %s65
    %p79 = scmp.eq.s32.totalorder %s19, 1
    %p80 = por %p78, %p79
    %p82 = scmp.ne.s32.totalorder %s65, %s81
    %p83 = scmp.eq.s32.totalorder %s19, 0
    %p84 = por %p82, %p83
    %s85 = ssub.s32 %s21, %s28
    %p86 = scmp.eq.s32.totalorder %s85, 0
    %s88 = sadd.s32 %s87, 1
    %s89 = scalar_select %p86, %s87, %s88
    %p92 = pneg %p86
    %p93 = scmp.eq.s32.totalorder %s13, 1
    %p94 = por %p92, %p93
    %p95 = scmp.ne.s32.totalorder %s87, %s90
    %p96 = scmp.eq.s32.totalorder %s13, 0
    %p97 = por %p95, %p96
    %p98 = scmp.ne.s32.totalorder %s87, %s90
    %p99 = scmp.eq.s32.totalorder %s18, 1
    %p100 = por %p98, %p99
    %p101 = scmp.ne.s32.totalorder %s90, %s91
    %p102 = scmp.eq.s32.totalorder %s18, 0
    %p103 = por %p101, %p102
    %p104 = scmp.ne.s32.totalorder %s90, %s91
    %p105 = scmp.eq.s32.totalorder %s19, 1
    %p106 = por %p104, %p105
    %p108 = scmp.ne.s32.totalorder %s91, %s107
    %p109 = scmp.eq.s32.totalorder %s19, 0
    %p110 = por %p108, %p109
    %s111 = ssub.s32 %s21, %s28
    %p112 = scmp.eq.s32.totalorder %s111, 0
    %s114 = sadd.s32 %s113, 1
    %s115 = scalar_select %p112, %s113, %s114
    %p118 = pneg %p112
    %p119 = scmp.eq.s32.totalorder %s13, 1
    %p120 = por %p118, %p119
    %p121 = scmp.ne.s32.totalorder %s113, %s116
    %p122 = scmp.eq.s32.totalorder %s13, 0
    %p123 = por %p121, %p122
    %p124 = scmp.ne.s32.totalorder %s113, %s116
    %p125 = scmp.eq.s32.totalorder %s18, 1
    %p126 = por %p124, %p125
    %p127 = scmp.ne.s32.totalorder %s116, %s117
    %p128 = scmp.eq.s32.totalorder %s18, 0
    %p129 = por %p127, %p128
    %p130 = scmp.ne.s32.totalorder %s116, %s117
    %p131 = scmp.eq.s32.totalorder %s19, 1
    %p132 = por %p130, %p131
    %p134 = scmp.ne.s32.totalorder %s117, %s133
    %p135 = scmp.eq.s32.totalorder %s19, 0
    %p136 = por %p134, %p135
    %s137 = ssub.s32 %s21, %s28
    %p138 = scmp.eq.s32.totalorder %s137, 0
    %s140 = sadd.s32 %s139, 1
    %s141 = scalar_select %p138, %s139, %s140
    %p144 = pneg %p138
    %p145 = scmp.eq.s32.totalorder %s13, 1
    %p146 = por %p144, %p145
    %p147 = scmp.ne.s32.totalorder %s139, %s142
    %p148 = scmp.eq.s32.totalorder %s13, 0
    %p149 = por %p147, %p148
    %p150 = scmp.ne.s32.totalorder %s139, %s142
    %p151 = scmp.eq.s32.totalorder %s18, 1
    %p152 = por %p150, %p151
    %p153 = scmp.ne.s32.totalorder %s142, %s143
    %p154 = scmp.eq.s32.totalorder %s18, 0
    %p155 = por %p153, %p154
    %p156 = scmp.ne.s32.totalorder %s142, %s143
    %p157 = scmp.eq.s32.totalorder %s19, 1
    %p158 = por %p156, %p157
    %p160 = scmp.ne.s32.totalorder %s143, %s159
    %p161 = scmp.eq.s32.totalorder %s19, 0
    %p162 = por %p160, %p161
    %s163 = ssub.s32 %s21, %s28
    %p164 = scmp.eq.s32.totalorder %s163, 0
    %s166 = sadd.s32 %s165, 1
    %s167 = scalar_select %p164, %s165, %s166
    %p170 = pneg %p164
    %p171 = scmp.eq.s32.totalorder %s13, 1
    %p172 = por %p170, %p171
    %p173 = scmp.ne.s32.totalorder %s165, %s168
    %p174 = scmp.eq.s32.totalorder %s13, 0
    %p175 = por %p173, %p174
    %p176 = scmp.ne.s32.totalorder %s165, %s168
    %p177 = scmp.eq.s32.totalorder %s18, 1
    %p178 = por %p176, %p177
    %p179 = scmp.ne.s32.totalorder %s168, %s169
    %p180 = scmp.eq.s32.totalorder %s18, 0
    %p181 = por %p179, %p180
    %p182 = scmp.ne.s32.totalorder %s168, %s169
    %p183 = scmp.eq.s32.totalorder %s19, 1
    %p184 = por %p182, %p183
    %p186 = scmp.ne.s32.totalorder %s169, %s185
    %p187 = scmp.eq.s32.totalorder %s19, 0
    %p188 = por %p186, %p187
    %s190 = sadd.s32 %s189, 1
    %p193 = scmp.eq.s32.totalorder %s13, 1
    %p194 = scmp.ne.s32.totalorder %s189, %s191
    %p195 = scmp.eq.s32.totalorder %s13, 0
    %p196 = por %p194, %p195
    %p197 = scmp.ne.s32.totalorder %s189, %s191
    %p198 = scmp.eq.s32.totalorder %s18, 1
    %p199 = por %p197, %p198
    %p200 = scmp.ne.s32.totalorder %s191, %s192
    %p201 = scmp.eq.s32.totalorder %s18, 0
    %p202 = por %p200, %p201
    %p203 = scmp.ne.s32.totalorder %s191, %s192
    %p204 = scmp.eq.s32.totalorder %s19, 1
    %p205 = por %p203, %p204
    %p207 = scmp.ne.s32.totalorder %s192, %s206
    %p208 = scmp.eq.s32.totalorder %s19, 0
    %p209 = por %p207, %p208
    %s210 = ssub.s32 %s20, %s32
    %p211 = scmp.eq.s32.totalorder %s210, 0
    %s213 = sadd.s32 %s212, 1
    %s214 = scalar_select %p211, %s212, %s213
    %p217 = pneg %p211
    %p218 = scmp.eq.s32.totalorder %s13, 1
    %p219 = por %p217, %p218
    %p220 = scmp.ne.s32.totalorder %s212, %s215
    %p221 = scmp.eq.s32.totalorder %s13, 0
    %p222 = por %p220, %p221
    %p223 = scmp.ne.s32.totalorder %s212, %s215
    %p224 = scmp.eq.s32.totalorder %s18, 1
    %p225 = por %p223, %p224
    %p226 = scmp.ne.s32.totalorder %s215, %s216
    %p227 = scmp.eq.s32.totalorder %s18, 0
    %p228 = por %p226, %p227
    %p229 = scmp.ne.s32.totalorder %s215, %s216
    %p230 = scmp.eq.s32.totalorder %s19, 1
    %p231 = por %p229, %p230
    %p233 = scmp.ne.s32.totalorder %s216, %s232
    %p234 = scmp.eq.s32.totalorder %s19, 0
    %p235 = por %p233, %p234
    %p236 = scmp.le.s32.totalorder 1, %s13
    %p237 = scmp.lt.s32.totalorder %s13, 3
    %p238 = pnand %p236, %p237
    %p239 = pneg %p238
    // Predicated region
    $region9: #{tpu_custom_call.1} parent=5 // pred_check
      _
    $region10: #{tpu_custom_call.1} parent=5 // pred_check_branch
      %241 = sbr.rel (%p238) target = $region12
    $region11: #{tpu_custom_call.1} parent=5 // pred_region
      %s242 = ssub.s32 %s13, 1
      // Predicated region
      $region13: #{tpu_custom_call.1} parent=11 // pred_check
        %p243 = pneg %p77
      $region14: #{tpu_custom_call.1} parent=11 // pred_check_branch
        %245 = sbr.rel (%p243) target = $region16
      $region15: #{tpu_custom_call.1} parent=11 // pred_region
        %p246 = scmp.lt.s32.totalorder %s23, 0
        %s247 = scalar_select %p246, %s23, 0
        %s248 = smul.addr %s247, 8
        %s249 = scalar_lea.vmem %s1, %s248
      $region16: #{tpu_custom_call.1} parent=11 // pred_fallthru
        _
      // Predicated region
      $region17: #{tpu_custom_call.1} parent=11 // pred_check
        %p250 = pneg %p103
      $region18: #{tpu_custom_call.1} parent=11 // pred_check_branch
        %252 = sbr.rel (%p250) target = $region20
      $region19: #{tpu_custom_call.1} parent=11 // pred_region
        %p253 = scmp.lt.s32.totalorder %s23, 0
        %s254 = scalar_select %p253, %s23, 0
        %s255 = scalar_lea.vmem %s2, %s254
      $region20: #{tpu_custom_call.1} parent=11 // pred_fallthru
        _
      // Predicated region
      $region21: #{tpu_custom_call.1} parent=11 // pred_check
        %p256 = pneg %p129
      $region22: #{tpu_custom_call.1} parent=11 // pred_check_branch
        %258 = sbr.rel (%p256) target = $region24
      $region23: #{tpu_custom_call.1} parent=11 // pred_region
        %p259 = scmp.lt.s32.totalorder %s23, 0
        %s260 = scalar_select %p259, %s23, 0
        %s261 = smul.addr %s260, 4
        %s262 = scalar_lea.vmem %s3, %s261
      $region24: #{tpu_custom_call.1} parent=11 // pred_fallthru
        _
      // Predicated region
      $region25: #{tpu_custom_call.1} parent=11 // pred_check
        %p263 = pneg %p155
      $region26: #{tpu_custom_call.1} parent=11 // pred_check_branch
        %265 = sbr.rel (%p263) target = $region28
      $region27: #{tpu_custom_call.1} parent=11 // pred_region
        %p266 = scmp.lt.s32.totalorder %s23, 0
        %s267 = scalar_select %p266, %s23, 0
        %s268 = scalar_lea.vmem %s4, %s267
      $region28: #{tpu_custom_call.1} parent=11 // pred_fallthru
        _
      // Predicated region
      $region29: #{tpu_custom_call.1} parent=11 // pred_check
        %p269 = pneg %p181
      $region30: #{tpu_custom_call.1} parent=11 // pred_check_branch
        %271 = sbr.rel (%p269) target = $region32
      $region31: #{tpu_custom_call.1} parent=11 // pred_region
        %s272 = smul.u32 6, %s23
        %p273 = scmp.lt.s32.totalorder %s272, 5
        %s274 = scalar_select %p273, %s272, 5
        %s275 = smul.addr %s274, 8
        %s276 = scalar_lea.vmem %s5, %s275
        %s277 = smul.u32 6, %s23
      $region32: #{tpu_custom_call.1} parent=11 // pred_fallthru
        _
      // Predicated region
      $region33: #{tpu_custom_call.1} parent=11 // pred_check
        %p278 = pneg %p202
      $region34: #{tpu_custom_call.1} parent=11 // pred_check_branch
        %280 = sbr.rel (%p278) target = $region36
      $region35: #{tpu_custom_call.1} parent=11 // pred_region
        _
      $region36: #{tpu_custom_call.1} parent=11 // pred_fallthru
        _
    $region12: #{tpu_custom_call.1} parent=5 // pred_fallthru
      _
    %p281 = scmp.lt.s32.totalorder %s13, 2
    // Predicated region
    $region37: #{tpu_custom_call.1} parent=5 // pred_check
      %p282 = pneg %p281
    $region38: #{tpu_custom_call.1} parent=5 // pred_check_branch
      %284 = sbr.rel (%p282) target = $region40
    $region39: #{tpu_custom_call.1} parent=5 // pred_region
      // Predicated region
      $region41: #{tpu_custom_call.1} parent=39 // pred_check
        %p285 = pneg %p45
      $region42: #{tpu_custom_call.1} parent=39 // pred_check_branch
        %287 = sbr.rel (%p285) target = $region44
      $region43: #{tpu_custom_call.1} parent=39 // pred_region
        %p288 = scmp.lt.s32.totalorder %s20, 1
        %s289 = scalar_select %p288, %s20, 1
        %s290 = smul.addr %s289, 32
        %s291 = smul.addr %s290, 8
        %s292 = scalar_lea.vmem %s0, %s291
      $region44: #{tpu_custom_call.1} parent=39 // pred_fallthru
        _
    $region40: #{tpu_custom_call.1} parent=5 // pred_fallthru
      _
    %p293 = scmp.le.s32.totalorder 1, %s13
    %p294 = scmp.lt.s32.totalorder %s13, 3
    %p295 = pnand %p293, %p294
    %p296 = pneg %p295
    // Predicated region
    $region45: #{tpu_custom_call.1} parent=5 // pred_check
      _
    $region46: #{tpu_custom_call.1} parent=5 // pred_check_branch
      %298 = sbr.rel (%p295) target = $region48
    $region47: #{tpu_custom_call.1} parent=5 // pred_region
      %s299 = ssub.s32 %s13, 1
      %p300 = scmp.lt.s32.totalorder %s22, 1
      %s301 = scalar_select %p300, %s22, 1
      %s302 = smul.addr %s301, 32
      %s303 = smul.addr %s302, 8
      %s304 = scalar_lea.vmem %s0, %s303
      %p305 = pneg %p51
      %p306 = pneg %p48
      %p307 = scmp.lt.s32.totalorder %s23, 0
      %s308 = scalar_select %p307, %s23, 0
      %s309 = smul.addr %s308, 8
      %s310 = scalar_lea.vmem %s1, %s309
      %p311 = pneg %p77
      %p312 = pneg %p74
      %p313 = scmp.lt.s32.totalorder %s23, 0
      %s314 = scalar_select %p313, %s23, 0
      %s315 = scalar_lea.vmem %s2, %s314
      %p316 = pneg %p103
      %p317 = pneg %p100
      %p318 = scmp.lt.s32.totalorder %s23, 0
      %s319 = scalar_select %p318, %s23, 0
      %s320 = smul.addr %s319, 4
      %s321 = scalar_lea.vmem %s3, %s320
      %p322 = pneg %p129
      %p323 = pneg %p126
      %p324 = scmp.lt.s32.totalorder %s23, 0
      %s325 = scalar_select %p324, %s23, 0
      %s326 = scalar_lea.vmem %s4, %s325
      %p327 = pneg %p155
      %p328 = pneg %p152
      %s329 = smul.u32 6, %s23
      %p330 = scmp.lt.s32.totalorder %s329, 5
      %s331 = scalar_select %p330, %s329, 5
      %s332 = smul.addr %s331, 8
      %s333 = scalar_lea.vmem %s5, %s332
      %p334 = pneg %p181
      %p335 = pneg %p178
      %p336 = pneg %p202
      %p337 = pneg %p199
      %p338 = pneg %p228
      %p339 = pneg %p225
      %p340 = scmp.lt.s32.totalorder %s22, 1
      %s341 = scalar_select %p340, %s22, 1
      %s342 = smul.addr %s341, 32
      %s343 = smul.addr %s342, 8
      %s344 = scalar_lea.vmem %s7, %s343
      %p345 = scmp.lt.s32.totalorder %s22, 1
      %s346 = scalar_select %p345, %s22, 1
      %s347 = smul.addr %s346, 32
      %s348 = smul.addr %s347, 8
      %s349 = scalar_lea.vmem %s0, %s348
      %p350 = scmp.lt.s32.totalorder %s23, 0
      %s351 = scalar_select %p350, %s23, 0
      %s352 = smul.addr %s351, 8
      %s353 = scalar_lea.vmem %s1, %s352
      %p354 = scmp.lt.s32.totalorder %s23, 0
      %s355 = scalar_select %p354, %s23, 0
      %s356 = scalar_lea.vmem %s2, %s355
      %p357 = scmp.lt.s32.totalorder %s23, 0
      %s358 = scalar_select %p357, %s23, 0
      %s359 = smul.addr %s358, 4
      %s360 = scalar_lea.vmem %s3, %s359
      %p361 = scmp.lt.s32.totalorder %s23, 0
      %s362 = scalar_select %p361, %s23, 0
      %s363 = scalar_lea.vmem %s4, %s362
      %s364 = smul.u32 6, %s23
      %p365 = scmp.lt.s32.totalorder %s364, 5
      %s366 = scalar_select %p365, %s364, 5
      %s367 = smul.addr %s366, 8
      %s368 = scalar_lea.vmem %s5, %s367
      %s369 = smul.u32 6, %s23
      %p370 = scmp.lt.s32.totalorder %s22, 1
      %s371 = scalar_select %p370, %s22, 1
      %s372 = smul.addr %s371, 32
      %s373 = smul.addr %s372, 8
      %s374 = scalar_lea.vmem %s7, %s373
      %vm375 = vcmask 392192
      %376 = vst.msk [vmem:[#allocation2] sm:$0xff] %vm375, 0.0
      %377 = vst.msk [vmem:[#allocation2 + $0x8] sm:$0xff] %vm375, 0.0
      %vm378 = vcmask 386048
      %379 = vst.msk [vmem:[#allocation2 + $0x10] sm:$0x3] %vm378, 0.0
      %380 = vst.msk [vmem:[#allocation2 + $0x18] sm:$0xff] %vm375, 0.0
      %381 = vst.msk [vmem:[#allocation2 + $0x20] sm:$0xff] %vm375, 0.0
      %382 = vst.msk [vmem:[#allocation2 + $0x28] sm:$0x3] %vm378, 0.0
      %383 = vst.msk [vmem:[#allocation2 + $0x30] sm:$0xff] %vm375, 0.0
      %384 = vst.msk [vmem:[#allocation2 + $0x38] sm:$0xff] %vm375, 0.0
      %385 = vst.msk [vmem:[#allocation2 + $0x40] sm:$0x3] %vm378, 0.0
      %386 = vst.msk [vmem:[#allocation2 + $0x48] sm:$0xff] %vm375, 0.0
      %387 = vst.msk [vmem:[#allocation2 + $0x50] sm:$0xff] %vm375, 0.0
      %388 = vst.msk [vmem:[#allocation2 + $0x58] sm:$0x3] %vm378, 0.0
      %389 = vst.msk [vmem:[#allocation2 + $0x60] sm:$0xff] %vm375, 0.0
      %390 = vst.msk [vmem:[#allocation2 + $0x68] sm:$0xff] %vm375, 0.0
      %391 = vst.msk [vmem:[#allocation2 + $0x70] sm:$0x3] %vm378, 0.0
      %392 = vst.msk [vmem:[#allocation2 + $0x78] sm:$0xff] %vm375, 0.0
      %393 = vst.msk [vmem:[#allocation2 + $0x80] sm:$0xff] %vm375, 0.0
      %394 = vst.msk [vmem:[#allocation2 + $0x88] sm:$0x3] %vm378, 0.0
      %395 = vst.msk [vmem:[#allocation2 + $0x90] sm:$0xff] %vm375, 0.0
      %396 = vst.msk [vmem:[#allocation2 + $0x98] sm:$0xff] %vm375, 0.0
      %397 = vst.msk [vmem:[#allocation2 + $0xa0] sm:$0x3] %vm378, 0.0
      %398 = vst.msk [vmem:[#allocation2 + $0xa8] sm:$0xff] %vm375, 0.0
      %399 = vst.msk [vmem:[#allocation2 + $0xb0] sm:$0xff] %vm375, 0.0
      %400 = vst.msk [vmem:[#allocation2 + $0xb8] sm:$0x3] %vm378, 0.0
      %401 = vst.msk [vmem:[#allocation2 + $0xc0] sm:$0xff] %vm375, 0.0
      %402 = vst.msk [vmem:[#allocation2 + $0xc8] sm:$0xff] %vm375, 0.0
      %403 = vst.msk [vmem:[#allocation2 + $0xd0] sm:$0x3] %vm378, 0.0
      %404 = vst.msk [vmem:[#allocation2 + $0xd8] sm:$0xff] %vm375, 0.0
      %405 = vst.msk [vmem:[#allocation2 + $0xe0] sm:$0xff] %vm375, 0.0
      %406 = vst.msk [vmem:[#allocation2 + $0xe8] sm:$0x3] %vm378, 0.0
      %407 = vst.msk [vmem:[#allocation2 + $0xf0] sm:$0xff] %vm375, 0.0
      %408 = vst.msk [vmem:[#allocation2 + $0xf8] sm:$0xff] %vm375, 0.0
      %409 = vst.msk [vmem:[#allocation2 + $0x100] sm:$0x3] %vm378, 0.0
      %410 = vst.msk [vmem:[#allocation2 + $0x108] sm:$0xff] %vm375, 0.0
      %411 = vst.msk [vmem:[#allocation2 + $0x110] sm:$0xff] %vm375, 0.0
      %412 = vst.msk [vmem:[#allocation2 + $0x118] sm:$0x3] %vm378, 0.0
      %413 = vst.msk [vmem:[#allocation2 + $0x120] sm:$0xff] %vm375, 0.0
      %414 = vst.msk [vmem:[#allocation2 + $0x128] sm:$0xff] %vm375, 0.0
      %415 = vst.msk [vmem:[#allocation2 + $0x130] sm:$0x3] %vm378, 0.0
      %416 = vst.msk [vmem:[#allocation2 + $0x138] sm:$0xff] %vm375, 0.0
      %417 = vst.msk [vmem:[#allocation2 + $0x140] sm:$0xff] %vm375, 0.0
      %418 = vst.msk [vmem:[#allocation2 + $0x148] sm:$0x3] %vm378, 0.0
      %419 = vst.msk [vmem:[#allocation2 + $0x150] sm:$0xff] %vm375, 0.0
      %420 = vst.msk [vmem:[#allocation2 + $0x158] sm:$0xff] %vm375, 0.0
      %421 = vst.msk [vmem:[#allocation2 + $0x160] sm:$0x3] %vm378, 0.0
      %422 = vst.msk [vmem:[#allocation2 + $0x168] sm:$0xff] %vm375, 0.0
      %423 = vst.msk [vmem:[#allocation2 + $0x170] sm:$0xff] %vm375, 0.0
      %424 = vst.msk [vmem:[#allocation2 + $0x178] sm:$0x3] %vm378, 0.0
      %425 = vst.msk [vmem:[#allocation2 + $0x180] sm:$0xff] %vm375, 0.0
      %426 = vst.msk [vmem:[#allocation2 + $0x188] sm:$0xff] %vm375, 0.0
      %427 = vst.msk [vmem:[#allocation2 + $0x190] sm:$0x3] %vm378, 0.0
      %428 = vst.msk [vmem:[#allocation2 + $0x198] sm:$0xff] %vm375, 0.0
      %429 = vst.msk [vmem:[#allocation2 + $0x1a0] sm:$0xff] %vm375, 0.0
      %430 = vst.msk [vmem:[#allocation2 + $0x1a8] sm:$0x3] %vm378, 0.0
      %v431 = vld [vmem:[%s349] sm:$0xff]
      %v432 = vld [vmem:[%s349 + $0x8] sm:$0xff]
      %v433 = vld [vmem:[%s349 + $0x10] sm:$0xff]
      %v434 = vld [vmem:[%s349 + $0x18] sm:$0xff]
      %v435 = vld [vmem:[%s349 + $0x20] sm:$0xff]
      %v436 = vld [vmem:[%s349 + $0x28] sm:$0xff]
      %v437 = vld [vmem:[%s349 + $0x30] sm:$0xff]
      %v438 = vld [vmem:[%s349 + $0x38] sm:$0xff]
      %v439 = vld [vmem:[%s349 + $0x40] sm:$0xff]
      %v440 = vld [vmem:[%s349 + $0x48] sm:$0xff]
      %v441 = vld [vmem:[%s349 + $0x50] sm:$0xff]
      %v442 = vld [vmem:[%s349 + $0x58] sm:$0xff]
      %v443 = vld [vmem:[%s349 + $0x60] sm:$0xff]
      %v444 = vld [vmem:[%s349 + $0x68] sm:$0xff]
      %v445 = vld [vmem:[%s349 + $0x70] sm:$0xff]
      %v446 = vld [vmem:[%s349 + $0x78] sm:$0xff]
      %v447 = vld [vmem:[%s349 + $0x80] sm:$0xff]
      %v448 = vld [vmem:[%s349 + $0x88] sm:$0xff]
      %v449 = vld [vmem:[%s349 + $0x90] sm:$0xff]
      %v450 = vld [vmem:[%s349 + $0x98] sm:$0xff]
      %v451 = vld [vmem:[%s349 + $0xa0] sm:$0xff]
      %v452 = vld [vmem:[%s349 + $0xa8] sm:$0xff]
      %v453 = vld [vmem:[%s349 + $0xb0] sm:$0xff]
      %v454 = vld [vmem:[%s349 + $0xb8] sm:$0xff]
      %v455 = vld [vmem:[%s349 + $0xc0] sm:$0xff]
      %v456 = vld [vmem:[%s349 + $0xc8] sm:$0xff]
      %v457 = vld [vmem:[%s349 + $0xd0] sm:$0xff]
      %v458 = vld [vmem:[%s349 + $0xd8] sm:$0xff]
      %v459 = vld [vmem:[%s349 + $0xe0] sm:$0xff]
      %v460 = vld [vmem:[%s349 + $0xe8] sm:$0xff]
      %v461 = vld [vmem:[%s349 + $0xf0] sm:$0xff]
      %v462 = vld [vmem:[%s349 + $0xf8] sm:$0xff]
      %v463 = vld [vmem:[%s353] sm:$0xff]
      %v464 = vld [vmem:[%s356] sm:$0x1]
      %v466 = vlaneseq
      %v467 = vshrl.u32 %v466, 7
      %v468 = vsub.s32 0, %v467
      %v469 = vrot.slane %v464, %v468
      %vm471 = vcmask 64512
      %v473 = vsel %vm471, %v431, 0
      %v476 = vsel %vm471, %v432, 0
      %v479 = vsel %vm471, %v433, 0
      %v482 = vsel %vm471, %v434, 0
      %v485 = vsel %vm471, %v435, 0
      %v488 = vsel %vm471, %v436, 0
      %v491 = vsel %vm471, %v437, 0
      %v494 = vsel %vm471, %v438, 0
      %v497 = vsel %vm471, %v439, 0
      %v500 = vsel %vm471, %v440, 0
      %v503 = vsel %vm471, %v441, 0
      %v506 = vsel %vm471, %v442, 0
      %v509 = vsel %vm471, %v443, 0
      %v512 = vsel %vm471, %v444, 0
      %v515 = vsel %vm471, %v445, 0
      %v518 = vsel %vm471, %v446, 0
      %v521 = vsel %vm471, %v447, 0
      %v524 = vsel %vm471, %v448, 0
      %v527 = vsel %vm471, %v449, 0
      %v530 = vsel %vm471, %v450, 0
      %v533 = vsel %vm471, %v451, 0
      %v536 = vsel %vm471, %v452, 0
      %v539 = vsel %vm471, %v453, 0
      %v542 = vsel %vm471, %v454, 0
      %v545 = vsel %vm471, %v455, 0
      %v548 = vsel %vm471, %v456, 0
      %v551 = vsel %vm471, %v457, 0
      %v554 = vsel %vm471, %v458, 0
      %v557 = vsel %vm471, %v459, 0
      %v560 = vsel %vm471, %v460, 0
      %v563 = vsel %vm471, %v461, 0
      %v566 = vsel %vm471, %v462, 0
      %568 = vmatprep.subr.mxu0 0.0
      %569 = vmatpush1.msra.mxu0 %v463
      %570 = vmatprep.subr.mxu0 0.0
      %571 = vmatpush1.msra.mxu0 0.0
      %572 = vmatprep.subr.mxu0 0.0
      %573 = vmatpush1.msra.mxu0 0.0
      %574 = vmatprep.subr.mxu0 0.0
      %575 = vmatpush1.msra.mxu0 0.0
      %576 = vmatprep.subr.mxu0 0.0
      %577 = vmatpush1.msra.mxu0 0.0
      %578 = vmatprep.subr.mxu0 0.0
      %579 = vmatpush1.msra.mxu0 0.0
      %580 = vmatprep.subr.mxu0 0.0
      %581 = vmatpush1.msra.mxu0 0.0
      %582 = vmatprep.subr.mxu0 0.0
      %583 = vmatpush1.msra.mxu0 0.0
      %584 = vmatprep.subr.mxu0 0.0
      %585 = vmatpush1.msra.mxu0 0.0
      %586 = vmatprep.subr.mxu0 0.0
      %587 = vmatpush1.msra.mxu0 0.0
      %588 = vmatprep.subr.mxu0 0.0
      %589 = vmatpush1.msra.mxu0 0.0
      %590 = vmatprep.subr.mxu0 0.0
      %591 = vmatpush1.msra.mxu0 0.0
      %592 = vmatprep.subr.mxu0 0.0
      %593 = vmatpush1.msra.mxu0 0.0
      %594 = vmatprep.subr.mxu0 0.0
      %595 = vmatpush1.msra.mxu0 0.0
      %596 = vmatprep.subr.mxu0 0.0
      %597 = vmatpush1.msra.mxu0 0.0
      %598 = vmatprep.subr.mxu0 0.0
      %599 = vmatpush1.msra.mxu0 0.0
      %600 = vmatprep.subr.mxu0 0.0
      %601 = vmatpush1.msra.mxu0 0.0
      %602 = vmatprep.subr.mxu0 0.0
      %603 = vmatpush1.msra.mxu0 0.0
      %604 = vmatprep.subr.mxu0 0.0
      %605 = vmatpush1.msra.mxu0 0.0
      %606 = vmatprep.subr.mxu0 0.0
      %607 = vmatpush1.msra.mxu0 0.0
      %608 = vmatprep.subr.mxu0 0.0
      %609 = vmatpush1.msra.mxu0 0.0
      %610 = vmatprep.subr.mxu0 0.0
      %611 = vmatpush1.msra.mxu0 0.0
      %612 = vmatprep.subr.mxu0 0.0
      %613 = vmatpush1.msra.mxu0 0.0
      %614 = vmatprep.subr.mxu0 0.0
      %615 = vmatpush1.msra.mxu0 0.0
      %616 = vmatprep.subr.mxu0 0.0
      %617 = vmatpush1.msra.mxu0 0.0
      %618 = vmatprep.subr.mxu0 0.0
      %619 = vmatpush1.msra.mxu0 0.0
      %620 = vmatprep.subr.mxu0 0.0
      %621 = vmatpush1.msra.mxu0 0.0
      %622 = vmatprep.subr.mxu0 0.0
      %623 = vmatpush1.msra.mxu0 0.0
      %624 = vmatprep.subr.mxu0 0.0
      %625 = vmatpush1.msra.mxu0 0.0
      %626 = vmatprep.subr.mxu0 0.0
      %627 = vmatpush1.msra.mxu0 0.0
      %628 = vmatprep.subr.mxu0 0.0
      %629 = vmatpush1.msra.mxu0 0.0
      %630 = vmatprep.subr.mxu0 0.0
      %631 = vmatpush1.msra.mxu0 0.0
      %632 = vmatprep.mubr.f32.mxu0 0.0
      %633 = vmatmul.mubr.f32.gmra.mrb[0].mxu0 %v473
      %v634 = vpop.f32.mrb[0].mxu0
      %v635 = vadd.f32 %v469, %v634
      %v636 = vpop.f32.mrb[0].mxu0
      %637 = vmatprep.mubr.f32.mxu0 0.0
      %638 = vmatmul.mubr.f32.gmra.mrb[0].mxu0 %v476
      %v639 = vpop.f32.mrb[0].mxu0
      %v640 = vadd.f32 %v469, %v639
      %v641 = vpop.f32.mrb[0].mxu0
      %642 = vmatprep.mubr.f32.mxu0 0.0
      %643 = vmatmul.mubr.f32.gmra.mrb[0].mxu0 %v479
      %v644 = vpop.f32.mrb[0].mxu0
      %v645 = vadd.f32 %v469, %v644
      %v646 = vpop.f32.mrb[0].mxu0
      %647 = vmatprep.mubr.f32.mxu0 0.0
      %648 = vmatmul.mubr.f32.gmra.mrb[0].mxu0 %v482
      %v649 = vpop.f32.mrb[0].mxu0
      %v650 = vadd.f32 %v469, %v649
      %v651 = vpop.f32.mrb[0].mxu0
      %652 = vmatprep.mubr.f32.mxu0 0.0
      %653 = vmatmul.mubr.f32.gmra.mrb[0].mxu0 %v485
      %v654 = vpop.f32.mrb[0].mxu0
      %v655 = vadd.f32 %v469, %v654
      %v656 = vpop.f32.mrb[0].mxu0
      %657 = vmatprep.mubr.f32.mxu0 0.0
      %658 = vmatmul.mubr.f32.gmra.mrb[0].mxu0 %v488
      %v659 = vpop.f32.mrb[0].mxu0
      %v660 = vadd.f32 %v469, %v659
      %v661 = vpop.f32.mrb[0].mxu0
      %662 = vmatprep.mubr.f32.mxu0 0.0
      %663 = vmatmul.mubr.f32.gmra.mrb[0].mxu0 %v491
      %v664 = vpop.f32.mrb[0].mxu0
      %v665 = vadd.f32 %v469, %v664
      %v666 = vpop.f32.mrb[0].mxu0
      %667 = vmatprep.mubr.f32.mxu0 0.0
      %668 = vmatmul.mubr.f32.gmra.mrb[0].mxu0 %v494
      %v669 = vpop.f32.mrb[0].mxu0
      %v670 = vadd.f32 %v469, %v669
      %v671 = vpop.f32.mrb[0].mxu0
      %672 = vmatprep.mubr.f32.mxu0 0.0
      %673 = vmatmul.mubr.f32.gmra.mrb[0].mxu0 %v497
      %v674 = vpop.f32.mrb[0].mxu0
      %v675 = vadd.f32 %v469, %v674
      %v676 = vpop.f32.mrb[0].mxu0
      %677 = vmatprep.mubr.f32.mxu0 0.0
      %678 = vmatmul.mubr.f32.gmra.mrb[0].mxu0 %v500
      %v679 = vpop.f32.mrb[0].mxu0
      %v680 = vadd.f32 %v469, %v679
      %v681 = vpop.f32.mrb[0].mxu0
      %682 = vmatprep.mubr.f32.mxu0 0.0
      %683 = vmatmul.mubr.f32.gmra.mrb[0].mxu0 %v503
      %v684 = vpop.f32.mrb[0].mxu0
      %v685 = vadd.f32 %v469, %v684
      %v686 = vpop.f32.mrb[0].mxu0
      %687 = vmatprep.mubr.f32.mxu0 0.0
      %688 = vmatmul.mubr.f32.gmra.mrb[0].mxu0 %v506
      %v689 = vpop.f32.mrb[0].mxu0
      %v690 = vadd.f32 %v469, %v689
      %v691 = vpop.f32.mrb[0].mxu0
      %692 = vmatprep.mubr.f32.mxu0 0.0
      %693 = vmatmul.mubr.f32.gmra.mrb[0].mxu0 %v509
      %v694 = vpop.f32.mrb[0].mxu0
      %v695 = vadd.f32 %v469, %v694
      %v696 = vpop.f32.mrb[0].mxu0
      %697 = vmatprep.mubr.f32.mxu0 0.0
      %698 = vmatmul.mubr.f32.gmra.mrb[0].mxu0 %v512
      %v699 = vpop.f32.mrb[0].mxu0
      %v700 = vadd.f32 %v469, %v699
      %v701 = vpop.f32.mrb[0].mxu0
      %702 = vmatprep.mubr.f32.mxu0 0.0
      %703 = vmatmul.mubr.f32.gmra.mrb[0].mxu0 %v515
      %v704 = vpop.f32.mrb[0].mxu0
      %v705 = vadd.f32 %v469, %v704
      %v706 = vpop.f32.mrb[0].mxu0
      %707 = vmatprep.mubr.f32.mxu0 0.0
      %708 = vmatmul.mubr.f32.gmra.mrb[0].mxu0 %v518
      %v709 = vpop.f32.mrb[0].mxu0
      %v710 = vadd.f32 %v469, %v709
      %v711 = vpop.f32.mrb[0].mxu0
      %712 = vmatprep.mubr.f32.mxu0 0.0
      %713 = vmatmul.mubr.f32.gmra.mrb[0].mxu0 %v521
      %v714 = vpop.f32.mrb[0].mxu0
      %v715 = vadd.f32 %v469, %v714
      %v716 = vpop.f32.mrb[0].mxu0
      %717 = vmatprep.mubr.f32.mxu0 0.0
      %718 = vmatmul.mubr.f32.gmra.mrb[0].mxu0 %v524
      %v719 = vpop.f32.mrb[0].mxu0
      %v720 = vadd.f32 %v469, %v719
      %v721 = vpop.f32.mrb[0].mxu0
      %722 = vmatprep.mubr.f32.mxu0 0.0
      %723 = vmatmul.mubr.f32.gmra.mrb[0].mxu0 %v527
      %v724 = vpop.f32.mrb[0].mxu0
      %v725 = vadd.f32 %v469, %v724
      %v726 = vpop.f32.mrb[0].mxu0
      %727 = vmatprep.mubr.f32.mxu0 0.0
      %728 = vmatmul.mubr.f32.gmra.mrb[0].mxu0 %v530
      %v729 = vpop.f32.mrb[0].mxu0
      %v730 = vadd.f32 %v469, %v729
      %v731 = vpop.f32.mrb[0].mxu0
      %732 = vmatprep.mubr.f32.mxu0 0.0
      %733 = vmatmul.mubr.f32.gmra.mrb[0].mxu0 %v533
      %v734 = vpop.f32.mrb[0].mxu0
      %v735 = vadd.f32 %v469, %v734
      %v736 = vpop.f32.mrb[0].mxu0
      %737 = vmatprep.mubr.f32.mxu0 0.0
      %738 = vmatmul.mubr.f32.gmra.mrb[0].mxu0 %v536
      %v739 = vpop.f32.mrb[0].mxu0
      %v740 = vadd.f32 %v469, %v739
      %v741 = vpop.f32.mrb[0].mxu0
      %742 = vmatprep.mubr.f32.mxu0 0.0
      %743 = vmatmul.mubr.f32.gmra.mrb[0].mxu0 %v539
      %v744 = vpop.f32.mrb[0].mxu0
      %v745 = vadd.f32 %v469, %v744
      %v746 = vpop.f32.mrb[0].mxu0
      %747 = vmatprep.mubr.f32.mxu0 0.0
      %748 = vmatmul.mubr.f32.gmra.mrb[0].mxu0 %v542
      %v749 = vpop.f32.mrb[0].mxu0
      %v750 = vadd.f32 %v469, %v749
      %v751 = vpop.f32.mrb[0].mxu0
      %752 = vmatprep.mubr.f32.mxu0 0.0
      %753 = vmatmul.mubr.f32.gmra.mrb[0].mxu0 %v545
      %v754 = vpop.f32.mrb[0].mxu0
      %v755 = vadd.f32 %v469, %v754
      %v756 = vpop.f32.mrb[0].mxu0
      %757 = vmatprep.mubr.f32.mxu0 0.0
      %758 = vmatmul.mubr.f32.gmra.mrb[0].mxu0 %v548
      %v759 = vpop.f32.mrb[0].mxu0
      %v760 = vadd.f32 %v469, %v759
      %v761 = vpop.f32.mrb[0].mxu0
      %762 = vmatprep.mubr.f32.mxu0 0.0
      %763 = vmatmul.mubr.f32.gmra.mrb[0].mxu0 %v551
      %v764 = vpop.f32.mrb[0].mxu0
      %v765 = vadd.f32 %v469, %v764
      %v766 = vpop.f32.mrb[0].mxu0
      %767 = vmatprep.mubr.f32.mxu0 0.0
      %768 = vmatmul.mubr.f32.gmra.mrb[0].mxu0 %v554
      %v769 = vpop.f32.mrb[0].mxu0
      %v770 = vadd.f32 %v469, %v769
      %v771 = vpop.f32.mrb[0].mxu0
      %772 = vmatprep.mubr.f32.mxu0 0.0
      %773 = vmatmul.mubr.f32.gmra.mrb[0].mxu0 %v557
      %v774 = vpop.f32.mrb[0].mxu0
      %v775 = vadd.f32 %v469, %v774
      %v776 = vpop.f32.mrb[0].mxu0
      %777 = vmatprep.mubr.f32.mxu0 0.0
      %778 = vmatmul.mubr.f32.gmra.mrb[0].mxu0 %v560
      %v779 = vpop.f32.mrb[0].mxu0
      %v780 = vadd.f32 %v469, %v779
      %v781 = vpop.f32.mrb[0].mxu0
      %782 = vmatprep.mubr.f32.mxu0 0.0
      %783 = vmatmul.mubr.f32.gmra.mrb[0].mxu0 %v563
      %v784 = vpop.f32.mrb[0].mxu0
      %v785 = vadd.f32 %v469, %v784
      %v786 = vpop.f32.mrb[0].mxu0
      %787 = vmatprep.mubr.f32.mxu0 0.0
      %788 = vmatmul.mubr.f32.gmra.mrb[0].mxu0 %v566
      %v789 = vpop.f32.mrb[0].mxu0
      %v790 = vadd.f32 %v469, %v789
      %v791 = vpop.f32.mrb[0].mxu0
      %792 = vdwg.mxu0
      %v793 = vmax.f32 %v635, 0.0
      %v794 = vmax.f32 %v640, 0.0
      %v795 = vmax.f32 %v645, 0.0
      %v796 = vmax.f32 %v650, 0.0
      %v797 = vmax.f32 %v655, 0.0
      %v798 = vmax.f32 %v660, 0.0
      %v799 = vmax.f32 %v665, 0.0
      %v800 = vmax.f32 %v670, 0.0
      %v801 = vmax.f32 %v675, 0.0
      %v802 = vmax.f32 %v680, 0.0
      %v803 = vmax.f32 %v685, 0.0
      %v804 = vmax.f32 %v690, 0.0
      %v805 = vmax.f32 %v695, 0.0
      %v806 = vmax.f32 %v700, 0.0
      %v807 = vmax.f32 %v705, 0.0
      %v808 = vmax.f32 %v710, 0.0
      %v809 = vmax.f32 %v715, 0.0
      %v810 = vmax.f32 %v720, 0.0
      %v811 = vmax.f32 %v725, 0.0
      %v812 = vmax.f32 %v730, 0.0
      %v813 = vmax.f32 %v735, 0.0
      %v814 = vmax.f32 %v740, 0.0
      %v815 = vmax.f32 %v745, 0.0
      %v816 = vmax.f32 %v750, 0.0
      %v817 = vmax.f32 %v755, 0.0
      %v818 = vmax.f32 %v760, 0.0
      %v819 = vmax.f32 %v765, 0.0
      %v820 = vmax.f32 %v770, 0.0
      %v821 = vmax.f32 %v775, 0.0
      %v822 = vmax.f32 %v780, 0.0
      %v823 = vmax.f32 %v785, 0.0
      %v824 = vmax.f32 %v790, 0.0
      %v825 = vmin.f32 %v793, 6.0
      %v826 = vmin.f32 %v794, 6.0
      %v827 = vmin.f32 %v795, 6.0
      %v828 = vmin.f32 %v796, 6.0
      %v829 = vmin.f32 %v797, 6.0
      %v830 = vmin.f32 %v798, 6.0
      %v831 = vmin.f32 %v799, 6.0
      %v832 = vmin.f32 %v800, 6.0
      %v833 = vmin.f32 %v801, 6.0
      %v834 = vmin.f32 %v802, 6.0
      %v835 = vmin.f32 %v803, 6.0
      %v836 = vmin.f32 %v804, 6.0
      %v837 = vmin.f32 %v805, 6.0
      %v838 = vmin.f32 %v806, 6.0
      %v839 = vmin.f32 %v807, 6.0
      %v840 = vmin.f32 %v808, 6.0
      %v841 = vmin.f32 %v809, 6.0
      %v842 = vmin.f32 %v810, 6.0
      %v843 = vmin.f32 %v811, 6.0
      %v844 = vmin.f32 %v812, 6.0
      %v845 = vmin.f32 %v813, 6.0
      %v846 = vmin.f32 %v814, 6.0
      %v847 = vmin.f32 %v815, 6.0
      %v848 = vmin.f32 %v816, 6.0
      %v849 = vmin.f32 %v817, 6.0
      %v850 = vmin.f32 %v818, 6.0
      %v851 = vmin.f32 %v819, 6.0
      %v852 = vmin.f32 %v820, 6.0
      %v853 = vmin.f32 %v821, 6.0
      %v854 = vmin.f32 %v822, 6.0
      %v855 = vmin.f32 %v823, 6.0
      %v856 = vmin.f32 %v824, 6.0
      %s857 = scalar_lea.vmem [#allocation2], 24
      %858 = vst.msk [vmem:[%s857 + $0x1] sm:$0xff] %vm375, %v825
      %859 = vst.msk [vmem:[%s857 + $0x9] sm:$0xff] %vm375, %v826
      %860 = vst.msk [vmem:[%s857 + $0x19] sm:$0xff] %vm375, %v827
      %861 = vst.msk [vmem:[%s857 + $0x21] sm:$0xff] %vm375, %v828
      %862 = vst.msk [vmem:[%s857 + $0x31] sm:$0xff] %vm375, %v829
      %863 = vst.msk [vmem:[%s857 + $0x39] sm:$0xff] %vm375, %v830
      %864 = vst.msk [vmem:[%s857 + $0x49] sm:$0xff] %vm375, %v831
      %865 = vst.msk [vmem:[%s857 + $0x51] sm:$0xff] %vm375, %v832
      %866 = vst.msk [vmem:[%s857 + $0x61] sm:$0xff] %vm375, %v833
      %867 = vst.msk [vmem:[%s857 + $0x69] sm:$0xff] %vm375, %v834
      %868 = vst.msk [vmem:[%s857 + $0x79] sm:$0xff] %vm375, %v835
      %869 = vst.msk [vmem:[%s857 + $0x81] sm:$0xff] %vm375, %v836
      %870 = vst.msk [vmem:[%s857 + $0x91] sm:$0xff] %vm375, %v837
      %871 = vst.msk [vmem:[%s857 + $0x99] sm:$0xff] %vm375, %v838
      %872 = vst.msk [vmem:[%s857 + $0xa9] sm:$0xff] %vm375, %v839
      %873 = vst.msk [vmem:[%s857 + $0xb1] sm:$0xff] %vm375, %v840
      %874 = vst.msk [vmem:[%s857 + $0xc1] sm:$0xff] %vm375, %v841
      %875 = vst.msk [vmem:[%s857 + $0xc9] sm:$0xff] %vm375, %v842
      %876 = vst.msk [vmem:[%s857 + $0xd9] sm:$0xff] %vm375, %v843
      %877 = vst.msk [vmem:[%s857 + $0xe1] sm:$0xff] %vm375, %v844
      %878 = vst.msk [vmem:[%s857 + $0xf1] sm:$0xff] %vm375, %v845
      %879 = vst.msk [vmem:[%s857 + $0xf9] sm:$0xff] %vm375, %v846
      %880 = vst.msk [vmem:[%s857 + $0x109] sm:$0xff] %vm375, %v847
      %881 = vst.msk [vmem:[%s857 + $0x111] sm:$0xff] %vm375, %v848
      %882 = vst.msk [vmem:[%s857 + $0x121] sm:$0xff] %vm375, %v849
      %883 = vst.msk [vmem:[%s857 + $0x129] sm:$0xff] %vm375, %v850
      %884 = vst.msk [vmem:[%s857 + $0x139] sm:$0xff] %vm375, %v851
      %885 = vst.msk [vmem:[%s857 + $0x141] sm:$0xff] %vm375, %v852
      %886 = vst.msk [vmem:[%s857 + $0x151] sm:$0xff] %vm375, %v853
      %887 = vst.msk [vmem:[%s857 + $0x159] sm:$0xff] %vm375, %v854
      %888 = vst.msk [vmem:[%s857 + $0x169] sm:$0xff] %vm375, %v855
      %889 = vst.msk [vmem:[%s857 + $0x171] sm:$0xff] %vm375, %v856
      %v890 = vld [vmem:[%s360] sm:$0x7]
      %v891 = vld [vmem:[%s360 + $0x4] sm:$0x7]
      %v892 = vld [vmem:[%s360 + $0x8] sm:$0x7]
      %v893 = vld [vmem:[%s363] sm:$0x1]
      %v895 = vlaneseq
      %v896 = vshrl.u32 %v895, 7
      %v897 = vsub.s32 0, %v896
      %v898 = vrot.slane %v893, %v897
      %v900 = vld [vmem:[#allocation2] sm:$0xff]
      %v901 = vld [vmem:[#allocation2 + $0x8] sm:$0xff]
      %v902 = vld [vmem:[#allocation2 + $0x18] sm:$0xff]
      %v903 = vld [vmem:[#allocation2 + $0x20] sm:$0xff]
      %v904 = vld [vmem:[#allocation2 + $0x30] sm:$0xff]
      %v905 = vld [vmem:[#allocation2 + $0x38] sm:$0xff]
      %v906 = vld [vmem:[#allocation2 + $0x48] sm:$0xff]
      %v907 = vld [vmem:[#allocation2 + $0x50] sm:$0xff]
      %v908 = vld [vmem:[#allocation2 + $0x60] sm:$0xff]
      %v909 = vld [vmem:[#allocation2 + $0x68] sm:$0xff]
      %v910 = vld [vmem:[#allocation2 + $0x78] sm:$0xff]
      %v911 = vld [vmem:[#allocation2 + $0x80] sm:$0xff]
      %v912 = vld [vmem:[#allocation2 + $0x90] sm:$0xff]
      %v913 = vld [vmem:[#allocation2 + $0x98] sm:$0xff]
      %v914 = vld [vmem:[#allocation2 + $0xa8] sm:$0xff]
      %v915 = vld [vmem:[#allocation2 + $0xb0] sm:$0xff]
      %v916 = vld [vmem:[#allocation2 + $0xc0] sm:$0xff]
      %v917 = vld [vmem:[#allocation2 + $0xc8] sm:$0xff]
      %v918 = vld [vmem:[#allocation2 + $0xd8] sm:$0xff]
      %v919 = vld [vmem:[#allocation2 + $0xe0] sm:$0xff]
      %v920 = vld [vmem:[#allocation2 + $0xf0] sm:$0xff]
      %v921 = vld [vmem:[#allocation2 + $0xf8] sm:$0xff]
      %v922 = vld [vmem:[#allocation2 + $0x108] sm:$0xff]
      %v923 = vld [vmem:[#allocation2 + $0x110] sm:$0xff]
      %v924 = vld [vmem:[#allocation2 + $0x120] sm:$0xff]
      %v925 = vld [vmem:[#allocation2 + $0x128] sm:$0xff]
      %v926 = vld [vmem:[#allocation2 + $0x138] sm:$0xff]
      %v927 = vld [vmem:[#allocation2 + $0x140] sm:$0xff]
      %v928 = vld [vmem:[#allocation2 + $0x150] sm:$0xff]
      %v929 = vld [vmem:[#allocation2 + $0x158] sm:$0xff]
      %v930 = vld [vmem:[#allocation2 + $0x168] sm:$0xff]
      %v931 = vld [vmem:[#allocation2 + $0x170] sm:$0xff]
      %v932 = vlaneseq
      %v933 = vshrl.u32 %v932, 7
      %v934 = vsub.s32 0, %v933
      %v935 = vrot.slane %v890, %v934
      %v936 = vmul.f32 %v900, %v935
      %v937 = vmul.f32 %v901, %v935
      %v938 = vmul.f32 %v902, %v935
      %v939 = vmul.f32 %v903, %v935
      %v940 = vmul.f32 %v904, %v935
      %v941 = vmul.f32 %v905, %v935
      %v942 = vmul.f32 %v906, %v935
      %v943 = vmul.f32 %v907, %v935
      %v944 = vmul.f32 %v908, %v935
      %v945 = vmul.f32 %v909, %v935
      %v946 = vmul.f32 %v910, %v935
      %v947 = vmul.f32 %v911, %v935
      %v948 = vmul.f32 %v912, %v935
      %v949 = vmul.f32 %v913, %v935
      %v950 = vmul.f32 %v914, %v935
      %v951 = vmul.f32 %v915, %v935
      %v952 = vmul.f32 %v916, %v935
      %v953 = vmul.f32 %v917, %v935
      %v954 = vmul.f32 %v918, %v935
      %v955 = vmul.f32 %v919, %v935
      %v956 = vmul.f32 %v920, %v935
      %v957 = vmul.f32 %v921, %v935
      %v958 = vmul.f32 %v922, %v935
      %v959 = vmul.f32 %v923, %v935
      %v960 = vmul.f32 %v924, %v935
      %v961 = vmul.f32 %v925, %v935
      %v962 = vmul.f32 %v926, %v935
      %v963 = vmul.f32 %v927, %v935
      %v964 = vmul.f32 %v928, %v935
      %v965 = vmul.f32 %v929, %v935
      %v966 = vmul.f32 %v930, %v935
      %v967 = vmul.f32 %v931, %v935
      %v968 = vadd.f32 %v898, %v936
      %v969 = vadd.f32 %v898, %v937
      %v970 = vadd.f32 %v898, %v938
      %v971 = vadd.f32 %v898, %v939
      %v972 = vadd.f32 %v898, %v940
      %v973 = vadd.f32 %v898, %v941
      %v974 = vadd.f32 %v898, %v942
      %v975 = vadd.f32 %v898, %v943
      %v976 = vadd.f32 %v898, %v944
      %v977 = vadd.f32 %v898, %v945
      %v978 = vadd.f32 %v898, %v946
      %v979 = vadd.f32 %v898, %v947
      %v980 = vadd.f32 %v898, %v948
      %v981 = vadd.f32 %v898, %v949
      %v982 = vadd.f32 %v898, %v950
      %v983 = vadd.f32 %v898, %v951
      %v984 = vadd.f32 %v898, %v952
      %v985 = vadd.f32 %v898, %v953
      %v986 = vadd.f32 %v898, %v954
      %v987 = vadd.f32 %v898, %v955
      %v988 = vadd.f32 %v898, %v956
      %v989 = vadd.f32 %v898, %v957
      %v990 = vadd.f32 %v898, %v958
      %v991 = vadd.f32 %v898, %v959
      %v992 = vadd.f32 %v898, %v960
      %v993 = vadd.f32 %v898, %v961
      %v994 = vadd.f32 %v898, %v962
      %v995 = vadd.f32 %v898, %v963
      %v996 = vadd.f32 %v898, %v964
      %v997 = vadd.f32 %v898, %v965
      %v998 = vadd.f32 %v898, %v966
      %v999 = vadd.f32 %v898, %v967
      %v1000 = vld [vmem:[#allocation2 + $0x1] sm:$0xff]
      %v1001 = vld [vmem:[#allocation2 + $0x9] sm:$0xff]
      %v1002 = vld [vmem:[#allocation2 + $0x19] sm:$0xff]
      %v1003 = vld [vmem:[#allocation2 + $0x21] sm:$0xff]
      %v1004 = vld [vmem:[#allocation2 + $0x31] sm:$0xff]
      %v1005 = vld [vmem:[#allocation2 + $0x39] sm:$0xff]
      %v1006 = vld [vmem:[#allocation2 + $0x49] sm:$0xff]
      %v1007 = vld [vmem:[#allocation2 + $0x51] sm:$0xff]
      %v1008 = vld [vmem:[#allocation2 + $0x61] sm:$0xff]
      %v1009 = vld [vmem:[#allocation2 + $0x69] sm:$0xff]
      %v1010 = vld [vmem:[#allocation2 + $0x79] sm:$0xff]
      %v1011 = vld [vmem:[#allocation2 + $0x81] sm:$0xff]
      %v1012 = vld [vmem:[#allocation2 + $0x91] sm:$0xff]
      %v1013 = vld [vmem:[#allocation2 + $0x99] sm:$0xff]
      %v1014 = vld [vmem:[#allocation2 + $0xa9] sm:$0xff]
      %v1015 = vld [vmem:[#allocation2 + $0xb1] sm:$0xff]
      %v1016 = vld [vmem:[#allocation2 + $0xc1] sm:$0xff]
      %v1017 = vld [vmem:[#allocation2 + $0xc9] sm:$0xff]
      %v1018 = vld [vmem:[#allocation2 + $0xd9] sm:$0xff]
      %v1019 = vld [vmem:[#allocation2 + $0xe1] sm:$0xff]
      %v1020 = vld [vmem:[#allocation2 + $0xf1] sm:$0xff]
      %v1021 = vld [vmem:[#allocation2 + $0xf9] sm:$0xff]
      %v1022 = vld [vmem:[#allocation2 + $0x109] sm:$0xff]
      %v1023 = vld [vmem:[#allocation2 + $0x111] sm:$0xff]
      %v1024 = vld [vmem:[#allocation2 + $0x121] sm:$0xff]
      %v1025 = vld [vmem:[#allocation2 + $0x129] sm:$0xff]
      %v1026 = vld [vmem:[#allocation2 + $0x139] sm:$0xff]
      %v1027 = vld [vmem:[#allocation2 + $0x141] sm:$0xff]
      %v1028 = vld [vmem:[#allocation2 + $0x151] sm:$0xff]
      %v1029 = vld [vmem:[#allocation2 + $0x159] sm:$0xff]
      %v1030 = vld [vmem:[#allocation2 + $0x169] sm:$0xff]
      %v1031 = vld [vmem:[#allocation2 + $0x171] sm:$0xff]
      %v1032 = vlaneseq
      %v1033 = vshrl.u32 %v1032, 7
      %v1034 = vsub.s32 1, %v1033
      %v1035 = vrot.slane %v890, %v1034
      %v1036 = vmul.f32 %v1000, %v1035
      %v1037 = vmul.f32 %v1001, %v1035
      %v1038 = vmul.f32 %v1002, %v1035
      %v1039 = vmul.f32 %v1003, %v1035
      %v1040 = vmul.f32 %v1004, %v1035
      %v1041 = vmul.f32 %v1005, %v1035
      %v1042 = vmul.f32 %v1006, %v1035
      %v1043 = vmul.f32 %v1007, %v1035
      %v1044 = vmul.f32 %v1008, %v1035
      %v1045 = vmul.f32 %v1009, %v1035
      %v1046 = vmul.f32 %v1010, %v1035
      %v1047 = vmul.f32 %v1011, %v1035
      %v1048 = vmul.f32 %v1012, %v1035
      %v1049 = vmul.f32 %v1013, %v1035
      %v1050 = vmul.f32 %v1014, %v1035
      %v1051 = vmul.f32 %v1015, %v1035
      %v1052 = vmul.f32 %v1016, %v1035
      %v1053 = vmul.f32 %v1017, %v1035
      %v1054 = vmul.f32 %v1018, %v1035
      %v1055 = vmul.f32 %v1019, %v1035
      %v1056 = vmul.f32 %v1020, %v1035
      %v1057 = vmul.f32 %v1021, %v1035
      %v1058 = vmul.f32 %v1022, %v1035
      %v1059 = vmul.f32 %v1023, %v1035
      %v1060 = vmul.f32 %v1024, %v1035
      %v1061 = vmul.f32 %v1025, %v1035
      %v1062 = vmul.f32 %v1026, %v1035
      %v1063 = vmul.f32 %v1027, %v1035
      %v1064 = vmul.f32 %v1028, %v1035
      %v1065 = vmul.f32 %v1029, %v1035
      %v1066 = vmul.f32 %v1030, %v1035
      %v1067 = vmul.f32 %v1031, %v1035
      %v1068 = vadd.f32 %v968, %v1036
      %v1069 = vadd.f32 %v969, %v1037
      %v1070 = vadd.f32 %v970, %v1038
      %v1071 = vadd.f32 %v971, %v1039
      %v1072 = vadd.f32 %v972, %v1040
      %v1073 = vadd.f32 %v973, %v1041
      %v1074 = vadd.f32 %v974, %v1042
      %v1075 = vadd.f32 %v975, %v1043
      %v1076 = vadd.f32 %v976, %v1044
      %v1077 = vadd.f32 %v977, %v1045
      %v1078 = vadd.f32 %v978, %v1046
      %v1079 = vadd.f32 %v979, %v1047
      %v1080 = vadd.f32 %v980, %v1048
      %v1081 = vadd.f32 %v981, %v1049
      %v1082 = vadd.f32 %v982, %v1050
      %v1083 = vadd.f32 %v983, %v1051
      %v1084 = vadd.f32 %v984, %v1052
      %v1085 = vadd.f32 %v985, %v1053
      %v1086 = vadd.f32 %v986, %v1054
      %v1087 = vadd.f32 %v987, %v1055
      %v1088 = vadd.f32 %v988, %v1056
      %v1089 = vadd.f32 %v989, %v1057
      %v1090 = vadd.f32 %v990, %v1058
      %v1091 = vadd.f32 %v991, %v1059
      %v1092 = vadd.f32 %v992, %v1060
      %v1093 = vadd.f32 %v993, %v1061
      %v1094 = vadd.f32 %v994, %v1062
      %v1095 = vadd.f32 %v995, %v1063
      %v1096 = vadd.f32 %v996, %v1064
      %v1097 = vadd.f32 %v997, %v1065
      %v1098 = vadd.f32 %v998, %v1066
      %v1099 = vadd.f32 %v999, %v1067
      %v1100 = vld [vmem:[#allocation2 + $0x2] sm:$0xff]
      %v1101 = vld [vmem:[#allocation2 + $0xa] sm:$0xff]
      %v1102 = vld [vmem:[#allocation2 + $0x1a] sm:$0xff]
      %v1103 = vld [vmem:[#allocation2 + $0x22] sm:$0xff]
      %v1104 = vld [vmem:[#allocation2 + $0x32] sm:$0xff]
      %v1105 = vld [vmem:[#allocation2 + $0x3a] sm:$0xff]
      %v1106 = vld [vmem:[#allocation2 + $0x4a] sm:$0xff]
      %v1107 = vld [vmem:[#allocation2 + $0x52] sm:$0xff]
      %v1108 = vld [vmem:[#allocation2 + $0x62] sm:$0xff]
      %v1109 = vld [vmem:[#allocation2 + $0x6a] sm:$0xff]
      %v1110 = vld [vmem:[#allocation2 + $0x7a] sm:$0xff]
      %v1111 = vld [vmem:[#allocation2 + $0x82] sm:$0xff]
      %v1112 = vld [vmem:[#allocation2 + $0x92] sm:$0xff]
      %v1113 = vld [vmem:[#allocation2 + $0x9a] sm:$0xff]
      %v1114 = vld [vmem:[#allocation2 + $0xaa] sm:$0xff]
      %v1115 = vld [vmem:[#allocation2 + $0xb2] sm:$0xff]
      %v1116 = vld [vmem:[#allocation2 + $0xc2] sm:$0xff]
      %v1117 = vld [vmem:[#allocation2 + $0xca] sm:$0xff]
      %v1118 = vld [vmem:[#allocation2 + $0xda] sm:$0xff]
      %v1119 = vld [vmem:[#allocation2 + $0xe2] sm:$0xff]
      %v1120 = vld [vmem:[#allocation2 + $0xf2] sm:$0xff]
      %v1121 = vld [vmem:[#allocation2 + $0xfa] sm:$0xff]
      %v1122 = vld [vmem:[#allocation2 + $0x10a] sm:$0xff]
      %v1123 = vld [vmem:[#allocation2 + $0x112] sm:$0xff]
      %v1124 = vld [vmem:[#allocation2 + $0x122] sm:$0xff]
      %v1125 = vld [vmem:[#allocation2 + $0x12a] sm:$0xff]
      %v1126 = vld [vmem:[#allocation2 + $0x13a] sm:$0xff]
      %v1127 = vld [vmem:[#allocation2 + $0x142] sm:$0xff]
      %v1128 = vld [vmem:[#allocation2 + $0x152] sm:$0xff]
      %v1129 = vld [vmem:[#allocation2 + $0x15a] sm:$0xff]
      %v1130 = vld [vmem:[#allocation2 + $0x16a] sm:$0xff]
      %v1131 = vld [vmem:[#allocation2 + $0x172] sm:$0xff]
      %v1132 = vlaneseq
      %v1133 = vshrl.u32 %v1132, 7
      %v1134 = vsub.s32 2, %v1133
      %v1135 = vrot.slane %v890, %v1134
      %v1136 = vmul.f32 %v1100, %v1135
      %v1137 = vmul.f32 %v1101, %v1135
      %v1138 = vmul.f32 %v1102, %v1135
      %v1139 = vmul.f32 %v1103, %v1135
      %v1140 = vmul.f32 %v1104, %v1135
      %v1141 = vmul.f32 %v1105, %v1135
      %v1142 = vmul.f32 %v1106, %v1135
      %v1143 = vmul.f32 %v1107, %v1135
      %v1144 = vmul.f32 %v1108, %v1135
      %v1145 = vmul.f32 %v1109, %v1135
      %v1146 = vmul.f32 %v1110, %v1135
      %v1147 = vmul.f32 %v1111, %v1135
      %v1148 = vmul.f32 %v1112, %v1135
      %v1149 = vmul.f32 %v1113, %v1135
      %v1150 = vmul.f32 %v1114, %v1135
      %v1151 = vmul.f32 %v1115, %v1135
      %v1152 = vmul.f32 %v1116, %v1135
      %v1153 = vmul.f32 %v1117, %v1135
      %v1154 = vmul.f32 %v1118, %v1135
      %v1155 = vmul.f32 %v1119, %v1135
      %v1156 = vmul.f32 %v1120, %v1135
      %v1157 = vmul.f32 %v1121, %v1135
      %v1158 = vmul.f32 %v1122, %v1135
      %v1159 = vmul.f32 %v1123, %v1135
      %v1160 = vmul.f32 %v1124, %v1135
      %v1161 = vmul.f32 %v1125, %v1135
      %v1162 = vmul.f32 %v1126, %v1135
      %v1163 = vmul.f32 %v1127, %v1135
      %v1164 = vmul.f32 %v1128, %v1135
      %v1165 = vmul.f32 %v1129, %v1135
      %v1166 = vmul.f32 %v1130, %v1135
      %v1167 = vmul.f32 %v1131, %v1135
      %v1168 = vadd.f32 %v1068, %v1136
      %v1169 = vadd.f32 %v1069, %v1137
      %v1170 = vadd.f32 %v1070, %v1138
      %v1171 = vadd.f32 %v1071, %v1139
      %v1172 = vadd.f32 %v1072, %v1140
      %v1173 = vadd.f32 %v1073, %v1141
      %v1174 = vadd.f32 %v1074, %v1142
      %v1175 = vadd.f32 %v1075, %v1143
      %v1176 = vadd.f32 %v1076, %v1144
      %v1177 = vadd.f32 %v1077, %v1145
      %v1178 = vadd.f32 %v1078, %v1146
      %v1179 = vadd.f32 %v1079, %v1147
      %v1180 = vadd.f32 %v1080, %v1148
      %v1181 = vadd.f32 %v1081, %v1149
      %v1182 = vadd.f32 %v1082, %v1150
      %v1183 = vadd.f32 %v1083, %v1151
      %v1184 = vadd.f32 %v1084, %v1152
      %v1185 = vadd.f32 %v1085, %v1153
      %v1186 = vadd.f32 %v1086, %v1154
      %v1187 = vadd.f32 %v1087, %v1155
      %v1188 = vadd.f32 %v1088, %v1156
      %v1189 = vadd.f32 %v1089, %v1157
      %v1190 = vadd.f32 %v1090, %v1158
      %v1191 = vadd.f32 %v1091, %v1159
      %v1192 = vadd.f32 %v1092, %v1160
      %v1193 = vadd.f32 %v1093, %v1161
      %v1194 = vadd.f32 %v1094, %v1162
      %v1195 = vadd.f32 %v1095, %v1163
      %v1196 = vadd.f32 %v1096, %v1164
      %v1197 = vadd.f32 %v1097, %v1165
      %v1198 = vadd.f32 %v1098, %v1166
      %v1199 = vadd.f32 %v1099, %v1167
      %v1200 = vld [vmem:[%s857] sm:$0xff]
      %v1201 = vld [vmem:[%s857 + $0x8] sm:$0xff]
      %v1202 = vld [vmem:[%s857 + $0x18] sm:$0xff]
      %v1203 = vld [vmem:[%s857 + $0x20] sm:$0xff]
      %v1204 = vld [vmem:[%s857 + $0x30] sm:$0xff]
      %v1205 = vld [vmem:[%s857 + $0x38] sm:$0xff]
      %v1206 = vld [vmem:[%s857 + $0x48] sm:$0xff]
      %v1207 = vld [vmem:[%s857 + $0x50] sm:$0xff]
      %v1208 = vld [vmem:[%s857 + $0x60] sm:$0xff]
      %v1209 = vld [vmem:[%s857 + $0x68] sm:$0xff]
      %v1210 = vld [vmem:[%s857 + $0x78] sm:$0xff]
      %v1211 = vld [vmem:[%s857 + $0x80] sm:$0xff]
      %v1212 = vld [vmem:[%s857 + $0x90] sm:$0xff]
      %v1213 = vld [vmem:[%s857 + $0x98] sm:$0xff]
      %v1214 = vld [vmem:[%s857 + $0xa8] sm:$0xff]
      %v1215 = vld [vmem:[%s857 + $0xb0] sm:$0xff]
      %v1216 = vld [vmem:[%s857 + $0xc0] sm:$0xff]
      %v1217 = vld [vmem:[%s857 + $0xc8] sm:$0xff]
      %v1218 = vld [vmem:[%s857 + $0xd8] sm:$0xff]
      %v1219 = vld [vmem:[%s857 + $0xe0] sm:$0xff]
      %v1220 = vld [vmem:[%s857 + $0xf0] sm:$0xff]
      %v1221 = vld [vmem:[%s857 + $0xf8] sm:$0xff]
      %v1222 = vld [vmem:[%s857 + $0x108] sm:$0xff]
      %v1223 = vld [vmem:[%s857 + $0x110] sm:$0xff]
      %v1224 = vld [vmem:[%s857 + $0x120] sm:$0xff]
      %v1225 = vld [vmem:[%s857 + $0x128] sm:$0xff]
      %v1226 = vld [vmem:[%s857 + $0x138] sm:$0xff]
      %v1227 = vld [vmem:[%s857 + $0x140] sm:$0xff]
      %v1228 = vld [vmem:[%s857 + $0x150] sm:$0xff]
      %v1229 = vld [vmem:[%s857 + $0x158] sm:$0xff]
      %v1230 = vld [vmem:[%s857 + $0x168] sm:$0xff]
      %v1231 = vld [vmem:[%s857 + $0x170] sm:$0xff]
      %v1232 = vlaneseq
      %v1233 = vshrl.u32 %v1232, 7
      %v1234 = vsub.s32 0, %v1233
      %v1235 = vrot.slane %v891, %v1234
      %v1236 = vmul.f32 %v1200, %v1235
      %v1237 = vmul.f32 %v1201, %v1235
      %v1238 = vmul.f32 %v1202, %v1235
      %v1239 = vmul.f32 %v1203, %v1235
      %v1240 = vmul.f32 %v1204, %v1235
      %v1241 = vmul.f32 %v1205, %v1235
      %v1242 = vmul.f32 %v1206, %v1235
      %v1243 = vmul.f32 %v1207, %v1235
      %v1244 = vmul.f32 %v1208, %v1235
      %v1245 = vmul.f32 %v1209, %v1235
      %v1246 = vmul.f32 %v1210, %v1235
      %v1247 = vmul.f32 %v1211, %v1235
      %v1248 = vmul.f32 %v1212, %v1235
      %v1249 = vmul.f32 %v1213, %v1235
      %v1250 = vmul.f32 %v1214, %v1235
      %v1251 = vmul.f32 %v1215, %v1235
      %v1252 = vmul.f32 %v1216, %v1235
      %v1253 = vmul.f32 %v1217, %v1235
      %v1254 = vmul.f32 %v1218, %v1235
      %v1255 = vmul.f32 %v1219, %v1235
      %v1256 = vmul.f32 %v1220, %v1235
      %v1257 = vmul.f32 %v1221, %v1235
      %v1258 = vmul.f32 %v1222, %v1235
      %v1259 = vmul.f32 %v1223, %v1235
      %v1260 = vmul.f32 %v1224, %v1235
      %v1261 = vmul.f32 %v1225, %v1235
      %v1262 = vmul.f32 %v1226, %v1235
      %v1263 = vmul.f32 %v1227, %v1235
      %v1264 = vmul.f32 %v1228, %v1235
      %v1265 = vmul.f32 %v1229, %v1235
      %v1266 = vmul.f32 %v1230, %v1235
      %v1267 = vmul.f32 %v1231, %v1235
      %v1268 = vadd.f32 %v1168, %v1236
      %v1269 = vadd.f32 %v1169, %v1237
      %v1270 = vadd.f32 %v1170, %v1238
      %v1271 = vadd.f32 %v1171, %v1239
      %v1272 = vadd.f32 %v1172, %v1240
      %v1273 = vadd.f32 %v1173, %v1241
      %v1274 = vadd.f32 %v1174, %v1242
      %v1275 = vadd.f32 %v1175, %v1243
      %v1276 = vadd.f32 %v1176, %v1244
      %v1277 = vadd.f32 %v1177, %v1245
      %v1278 = vadd.f32 %v1178, %v1246
      %v1279 = vadd.f32 %v1179, %v1247
      %v1280 = vadd.f32 %v1180, %v1248
      %v1281 = vadd.f32 %v1181, %v1249
      %v1282 = vadd.f32 %v1182, %v1250
      %v1283 = vadd.f32 %v1183, %v1251
      %v1284 = vadd.f32 %v1184, %v1252
      %v1285 = vadd.f32 %v1185, %v1253
      %v1286 = vadd.f32 %v1186, %v1254
      %v1287 = vadd.f32 %v1187, %v1255
      %v1288 = vadd.f32 %v1188, %v1256
      %v1289 = vadd.f32 %v1189, %v1257
      %v1290 = vadd.f32 %v1190, %v1258
      %v1291 = vadd.f32 %v1191, %v1259
      %v1292 = vadd.f32 %v1192, %v1260
      %v1293 = vadd.f32 %v1193, %v1261
      %v1294 = vadd.f32 %v1194, %v1262
      %v1295 = vadd.f32 %v1195, %v1263
      %v1296 = vadd.f32 %v1196, %v1264
      %v1297 = vadd.f32 %v1197, %v1265
      %v1298 = vadd.f32 %v1198, %v1266
      %v1299 = vadd.f32 %v1199, %v1267
      %v1300 = vld [vmem:[%s857 + $0x1] sm:$0xff]
      %v1301 = vld [vmem:[%s857 + $0x9] sm:$0xff]
      %v1302 = vld [vmem:[%s857 + $0x19] sm:$0xff]
      %v1303 = vld [vmem:[%s857 + $0x21] sm:$0xff]
      %v1304 = vld [vmem:[%s857 + $0x31] sm:$0xff]
      %v1305 = vld [vmem:[%s857 + $0x39] sm:$0xff]
      %v1306 = vld [vmem:[%s857 + $0x49] sm:$0xff]
      %v1307 = vld [vmem:[%s857 + $0x51] sm:$0xff]
      %v1308 = vld [vmem:[%s857 + $0x61] sm:$0xff]
      %v1309 = vld [vmem:[%s857 + $0x69] sm:$0xff]
      %v1310 = vld [vmem:[%s857 + $0x79] sm:$0xff]
      %v1311 = vld [vmem:[%s857 + $0x81] sm:$0xff]
      %v1312 = vld [vmem:[%s857 + $0x91] sm:$0xff]
      %v1313 = vld [vmem:[%s857 + $0x99] sm:$0xff]
      %v1314 = vld [vmem:[%s857 + $0xa9] sm:$0xff]
      %v1315 = vld [vmem:[%s857 + $0xb1] sm:$0xff]
      %v1316 = vld [vmem:[%s857 + $0xc1] sm:$0xff]
      %v1317 = vld [vmem:[%s857 + $0xc9] sm:$0xff]
      %v1318 = vld [vmem:[%s857 + $0xd9] sm:$0xff]
      %v1319 = vld [vmem:[%s857 + $0xe1] sm:$0xff]
      %v1320 = vld [vmem:[%s857 + $0xf1] sm:$0xff]
      %v1321 = vld [vmem:[%s857 + $0xf9] sm:$0xff]
      %v1322 = vld [vmem:[%s857 + $0x109] sm:$0xff]
      %v1323 = vld [vmem:[%s857 + $0x111] sm:$0xff]
      %v1324 = vld [vmem:[%s857 + $0x121] sm:$0xff]
      %v1325 = vld [vmem:[%s857 + $0x129] sm:$0xff]
      %v1326 = vld [vmem:[%s857 + $0x139] sm:$0xff]
      %v1327 = vld [vmem:[%s857 + $0x141] sm:$0xff]
      %v1328 = vld [vmem:[%s857 + $0x151] sm:$0xff]
      %v1329 = vld [vmem:[%s857 + $0x159] sm:$0xff]
      %v1330 = vld [vmem:[%s857 + $0x169] sm:$0xff]
      %v1331 = vld [vmem:[%s857 + $0x171] sm:$0xff]
      %v1332 = vlaneseq
      %v1333 = vshrl.u32 %v1332, 7
      %v1334 = vsub.s32 1, %v1333
      %v1335 = vrot.slane %v891, %v1334
      %v1336 = vmul.f32 %v1300, %v1335
      %v1337 = vmul.f32 %v1301, %v1335
      %v1338 = vmul.f32 %v1302, %v1335
      %v1339 = vmul.f32 %v1303, %v1335
      %v1340 = vmul.f32 %v1304, %v1335
      %v1341 = vmul.f32 %v1305, %v1335
      %v1342 = vmul.f32 %v1306, %v1335
      %v1343 = vmul.f32 %v1307, %v1335
      %v1344 = vmul.f32 %v1308, %v1335
      %v1345 = vmul.f32 %v1309, %v1335
      %v1346 = vmul.f32 %v1310, %v1335
      %v1347 = vmul.f32 %v1311, %v1335
      %v1348 = vmul.f32 %v1312, %v1335
      %v1349 = vmul.f32 %v1313, %v1335
      %v1350 = vmul.f32 %v1314, %v1335
      %v1351 = vmul.f32 %v1315, %v1335
      %v1352 = vmul.f32 %v1316, %v1335
      %v1353 = vmul.f32 %v1317, %v1335
      %v1354 = vmul.f32 %v1318, %v1335
      %v1355 = vmul.f32 %v1319, %v1335
      %v1356 = vmul.f32 %v1320, %v1335
      %v1357 = vmul.f32 %v1321, %v1335
      %v1358 = vmul.f32 %v1322, %v1335
      %v1359 = vmul.f32 %v1323, %v1335
      %v1360 = vmul.f32 %v1324, %v1335
      %v1361 = vmul.f32 %v1325, %v1335
      %v1362 = vmul.f32 %v1326, %v1335
      %v1363 = vmul.f32 %v1327, %v1335
      %v1364 = vmul.f32 %v1328, %v1335
      %v1365 = vmul.f32 %v1329, %v1335
      %v1366 = vmul.f32 %v1330, %v1335
      %v1367 = vmul.f32 %v1331, %v1335
      %v1368 = vadd.f32 %v1268, %v1336
      %v1369 = vadd.f32 %v1269, %v1337
      %v1370 = vadd.f32 %v1270, %v1338
      %v1371 = vadd.f32 %v1271, %v1339
      %v1372 = vadd.f32 %v1272, %v1340
      %v1373 = vadd.f32 %v1273, %v1341
      %v1374 = vadd.f32 %v1274, %v1342
      %v1375 = vadd.f32 %v1275, %v1343
      %v1376 = vadd.f32 %v1276, %v1344
      %v1377 = vadd.f32 %v1277, %v1345
      %v1378 = vadd.f32 %v1278, %v1346
      %v1379 = vadd.f32 %v1279, %v1347
      %v1380 = vadd.f32 %v1280, %v1348
      %v1381 = vadd.f32 %v1281, %v1349
      %v1382 = vadd.f32 %v1282, %v1350
      %v1383 = vadd.f32 %v1283, %v1351
      %v1384 = vadd.f32 %v1284, %v1352
      %v1385 = vadd.f32 %v1285, %v1353
      %v1386 = vadd.f32 %v1286, %v1354
      %v1387 = vadd.f32 %v1287, %v1355
      %v1388 = vadd.f32 %v1288, %v1356
      %v1389 = vadd.f32 %v1289, %v1357
      %v1390 = vadd.f32 %v1290, %v1358
      %v1391 = vadd.f32 %v1291, %v1359
      %v1392 = vadd.f32 %v1292, %v1360
      %v1393 = vadd.f32 %v1293, %v1361
      %v1394 = vadd.f32 %v1294, %v1362
      %v1395 = vadd.f32 %v1295, %v1363
      %v1396 = vadd.f32 %v1296, %v1364
      %v1397 = vadd.f32 %v1297, %v1365
      %v1398 = vadd.f32 %v1298, %v1366
      %v1399 = vadd.f32 %v1299, %v1367
      %v1400 = vld [vmem:[%s857 + $0x2] sm:$0xff]
      %v1401 = vld [vmem:[%s857 + $0xa] sm:$0xff]
      %v1402 = vld [vmem:[%s857 + $0x1a] sm:$0xff]
      %v1403 = vld [vmem:[%s857 + $0x22] sm:$0xff]
      %v1404 = vld [vmem:[%s857 + $0x32] sm:$0xff]
      %v1405 = vld [vmem:[%s857 + $0x3a] sm:$0xff]
      %v1406 = vld [vmem:[%s857 + $0x4a] sm:$0xff]
      %v1407 = vld [vmem:[%s857 + $0x52] sm:$0xff]
      %v1408 = vld [vmem:[%s857 + $0x62] sm:$0xff]
      %v1409 = vld [vmem:[%s857 + $0x6a] sm:$0xff]
      %v1410 = vld [vmem:[%s857 + $0x7a] sm:$0xff]
      %v1411 = vld [vmem:[%s857 + $0x82] sm:$0xff]
      %v1412 = vld [vmem:[%s857 + $0x92] sm:$0xff]
      %v1413 = vld [vmem:[%s857 + $0x9a] sm:$0xff]
      %v1414 = vld [vmem:[%s857 + $0xaa] sm:$0xff]
      %v1415 = vld [vmem:[%s857 + $0xb2] sm:$0xff]
      %v1416 = vld [vmem:[%s857 + $0xc2] sm:$0xff]
      %v1417 = vld [vmem:[%s857 + $0xca] sm:$0xff]
      %v1418 = vld [vmem:[%s857 + $0xda] sm:$0xff]
      %v1419 = vld [vmem:[%s857 + $0xe2] sm:$0xff]
      %v1420 = vld [vmem:[%s857 + $0xf2] sm:$0xff]
      %v1421 = vld [vmem:[%s857 + $0xfa] sm:$0xff]
      %v1422 = vld [vmem:[%s857 + $0x10a] sm:$0xff]
      %v1423 = vld [vmem:[%s857 + $0x112] sm:$0xff]
      %v1424 = vld [vmem:[%s857 + $0x122] sm:$0xff]
      %v1425 = vld [vmem:[%s857 + $0x12a] sm:$0xff]
      %v1426 = vld [vmem:[%s857 + $0x13a] sm:$0xff]
      %v1427 = vld [vmem:[%s857 + $0x142] sm:$0xff]
      %v1428 = vld [vmem:[%s857 + $0x152] sm:$0xff]
      %v1429 = vld [vmem:[%s857 + $0x15a] sm:$0xff]
      %v1430 = vld [vmem:[%s857 + $0x16a] sm:$0xff]
      %v1431 = vld [vmem:[%s857 + $0x172] sm:$0xff]
      %v1432 = vlaneseq
      %v1433 = vshrl.u32 %v1432, 7
      %v1434 = vsub.s32 2, %v1433
      %v1435 = vrot.slane %v891, %v1434
      %v1436 = vmul.f32 %v1400, %v1435
      %v1437 = vmul.f32 %v1401, %v1435
      %v1438 = vmul.f32 %v1402, %v1435
      %v1439 = vmul.f32 %v1403, %v1435
      %v1440 = vmul.f32 %v1404, %v1435
      %v1441 = vmul.f32 %v1405, %v1435
      %v1442 = vmul.f32 %v1406, %v1435
      %v1443 = vmul.f32 %v1407, %v1435
      %v1444 = vmul.f32 %v1408, %v1435
      %v1445 = vmul.f32 %v1409, %v1435
      %v1446 = vmul.f32 %v1410, %v1435
      %v1447 = vmul.f32 %v1411, %v1435
      %v1448 = vmul.f32 %v1412, %v1435
      %v1449 = vmul.f32 %v1413, %v1435
      %v1450 = vmul.f32 %v1414, %v1435
      %v1451 = vmul.f32 %v1415, %v1435
      %v1452 = vmul.f32 %v1416, %v1435
      %v1453 = vmul.f32 %v1417, %v1435
      %v1454 = vmul.f32 %v1418, %v1435
      %v1455 = vmul.f32 %v1419, %v1435
      %v1456 = vmul.f32 %v1420, %v1435
      %v1457 = vmul.f32 %v1421, %v1435
      %v1458 = vmul.f32 %v1422, %v1435
      %v1459 = vmul.f32 %v1423, %v1435
      %v1460 = vmul.f32 %v1424, %v1435
      %v1461 = vmul.f32 %v1425, %v1435
      %v1462 = vmul.f32 %v1426, %v1435
      %v1463 = vmul.f32 %v1427, %v1435
      %v1464 = vmul.f32 %v1428, %v1435
      %v1465 = vmul.f32 %v1429, %v1435
      %v1466 = vmul.f32 %v1430, %v1435
      %v1467 = vmul.f32 %v1431, %v1435
      %v1468 = vadd.f32 %v1368, %v1436
      %v1469 = vadd.f32 %v1369, %v1437
      %v1470 = vadd.f32 %v1370, %v1438
      %v1471 = vadd.f32 %v1371, %v1439
      %v1472 = vadd.f32 %v1372, %v1440
      %v1473 = vadd.f32 %v1373, %v1441
      %v1474 = vadd.f32 %v1374, %v1442
      %v1475 = vadd.f32 %v1375, %v1443
      %v1476 = vadd.f32 %v1376, %v1444
      %v1477 = vadd.f32 %v1377, %v1445
      %v1478 = vadd.f32 %v1378, %v1446
      %v1479 = vadd.f32 %v1379, %v1447
      %v1480 = vadd.f32 %v1380, %v1448
      %v1481 = vadd.f32 %v1381, %v1449
      %v1482 = vadd.f32 %v1382, %v1450
      %v1483 = vadd.f32 %v1383, %v1451
      %v1484 = vadd.f32 %v1384, %v1452
      %v1485 = vadd.f32 %v1385, %v1453
      %v1486 = vadd.f32 %v1386, %v1454
      %v1487 = vadd.f32 %v1387, %v1455
      %v1488 = vadd.f32 %v1388, %v1456
      %v1489 = vadd.f32 %v1389, %v1457
      %v1490 = vadd.f32 %v1390, %v1458
      %v1491 = vadd.f32 %v1391, %v1459
      %v1492 = vadd.f32 %v1392, %v1460
      %v1493 = vadd.f32 %v1393, %v1461
      %v1494 = vadd.f32 %v1394, %v1462
      %v1495 = vadd.f32 %v1395, %v1463
      %v1496 = vadd.f32 %v1396, %v1464
      %v1497 = vadd.f32 %v1397, %v1465
      %v1498 = vadd.f32 %v1398, %v1466
      %v1499 = vadd.f32 %v1399, %v1467
      %s1500 = scalar_lea.vmem [#allocation2], 48
      %v1501 = vld [vmem:[%s1500] sm:$0xff]
      %v1502 = vld [vmem:[%s1500 + $0x8] sm:$0xff]
      %v1503 = vld [vmem:[%s1500 + $0x18] sm:$0xff]
      %v1504 = vld [vmem:[%s1500 + $0x20] sm:$0xff]
      %v1505 = vld [vmem:[%s1500 + $0x30] sm:$0xff]
      %v1506 = vld [vmem:[%s1500 + $0x38] sm:$0xff]
      %v1507 = vld [vmem:[%s1500 + $0x48] sm:$0xff]
      %v1508 = vld [vmem:[%s1500 + $0x50] sm:$0xff]
      %v1509 = vld [vmem:[%s1500 + $0x60] sm:$0xff]
      %v1510 = vld [vmem:[%s1500 + $0x68] sm:$0xff]
      %v1511 = vld [vmem:[%s1500 + $0x78] sm:$0xff]
      %v1512 = vld [vmem:[%s1500 + $0x80] sm:$0xff]
      %v1513 = vld [vmem:[%s1500 + $0x90] sm:$0xff]
      %v1514 = vld [vmem:[%s1500 + $0x98] sm:$0xff]
      %v1515 = vld [vmem:[%s1500 + $0xa8] sm:$0xff]
      %v1516 = vld [vmem:[%s1500 + $0xb0] sm:$0xff]
      %v1517 = vld [vmem:[%s1500 + $0xc0] sm:$0xff]
      %v1518 = vld [vmem:[%s1500 + $0xc8] sm:$0xff]
      %v1519 = vld [vmem:[%s1500 + $0xd8] sm:$0xff]
      %v1520 = vld [vmem:[%s1500 + $0xe0] sm:$0xff]
      %v1521 = vld [vmem:[%s1500 + $0xf0] sm:$0xff]
      %v1522 = vld [vmem:[%s1500 + $0xf8] sm:$0xff]
      %v1523 = vld [vmem:[%s1500 + $0x108] sm:$0xff]
      %v1524 = vld [vmem:[%s1500 + $0x110] sm:$0xff]
      %v1525 = vld [vmem:[%s1500 + $0x120] sm:$0xff]
      %v1526 = vld [vmem:[%s1500 + $0x128] sm:$0xff]
      %v1527 = vld [vmem:[%s1500 + $0x138] sm:$0xff]
      %v1528 = vld [vmem:[%s1500 + $0x140] sm:$0xff]
      %v1529 = vld [vmem:[%s1500 + $0x150] sm:$0xff]
      %v1530 = vld [vmem:[%s1500 + $0x158] sm:$0xff]
      %v1531 = vld [vmem:[%s1500 + $0x168] sm:$0xff]
      %v1532 = vld [vmem:[%s1500 + $0x170] sm:$0xff]
      %v1533 = vlaneseq
      %v1534 = vshrl.u32 %v1533, 7
      %v1535 = vsub.s32 0, %v1534
      %v1536 = vrot.slane %v892, %v1535
      %v1537 = vmul.f32 %v1501, %v1536
      %v1538 = vmul.f32 %v1502, %v1536
      %v1539 = vmul.f32 %v1503, %v1536
      %v1540 = vmul.f32 %v1504, %v1536
      %v1541 = vmul.f32 %v1505, %v1536
      %v1542 = vmul.f32 %v1506, %v1536
      %v1543 = vmul.f32 %v1507, %v1536
      %v1544 = vmul.f32 %v1508, %v1536
      %v1545 = vmul.f32 %v1509, %v1536
      %v1546 = vmul.f32 %v1510, %v1536
      %v1547 = vmul.f32 %v1511, %v1536
      %v1548 = vmul.f32 %v1512, %v1536
      %v1549 = vmul.f32 %v1513, %v1536
      %v1550 = vmul.f32 %v1514, %v1536
      %v1551 = vmul.f32 %v1515, %v1536
      %v1552 = vmul.f32 %v1516, %v1536
      %v1553 = vmul.f32 %v1517, %v1536
      %v1554 = vmul.f32 %v1518, %v1536
      %v1555 = vmul.f32 %v1519, %v1536
      %v1556 = vmul.f32 %v1520, %v1536
      %v1557 = vmul.f32 %v1521, %v1536
      %v1558 = vmul.f32 %v1522, %v1536
      %v1559 = vmul.f32 %v1523, %v1536
      %v1560 = vmul.f32 %v1524, %v1536
      %v1561 = vmul.f32 %v1525, %v1536
      %v1562 = vmul.f32 %v1526, %v1536
      %v1563 = vmul.f32 %v1527, %v1536
      %v1564 = vmul.f32 %v1528, %v1536
      %v1565 = vmul.f32 %v1529, %v1536
      %v1566 = vmul.f32 %v1530, %v1536
      %v1567 = vmul.f32 %v1531, %v1536
      %v1568 = vmul.f32 %v1532, %v1536
      %v1569 = vadd.f32 %v1468, %v1537
      %v1570 = vadd.f32 %v1469, %v1538
      %v1571 = vadd.f32 %v1470, %v1539
      %v1572 = vadd.f32 %v1471, %v1540
      %v1573 = vadd.f32 %v1472, %v1541
      %v1574 = vadd.f32 %v1473, %v1542
      %v1575 = vadd.f32 %v1474, %v1543
      %v1576 = vadd.f32 %v1475, %v1544
      %v1577 = vadd.f32 %v1476, %v1545
      %v1578 = vadd.f32 %v1477, %v1546
      %v1579 = vadd.f32 %v1478, %v1547
      %v1580 = vadd.f32 %v1479, %v1548
      %v1581 = vadd.f32 %v1480, %v1549
      %v1582 = vadd.f32 %v1481, %v1550
      %v1583 = vadd.f32 %v1482, %v1551
      %v1584 = vadd.f32 %v1483, %v1552
      %v1585 = vadd.f32 %v1484, %v1553
      %v1586 = vadd.f32 %v1485, %v1554
      %v1587 = vadd.f32 %v1486, %v1555
      %v1588 = vadd.f32 %v1487, %v1556
      %v1589 = vadd.f32 %v1488, %v1557
      %v1590 = vadd.f32 %v1489, %v1558
      %v1591 = vadd.f32 %v1490, %v1559
      %v1592 = vadd.f32 %v1491, %v1560
      %v1593 = vadd.f32 %v1492, %v1561
      %v1594 = vadd.f32 %v1493, %v1562
      %v1595 = vadd.f32 %v1494, %v1563
      %v1596 = vadd.f32 %v1495, %v1564
      %v1597 = vadd.f32 %v1496, %v1565
      %v1598 = vadd.f32 %v1497, %v1566
      %v1599 = vadd.f32 %v1498, %v1567
      %v1600 = vadd.f32 %v1499, %v1568
      %v1601 = vld [vmem:[%s1500 + $0x1] sm:$0xff]
      %v1602 = vld [vmem:[%s1500 + $0x9] sm:$0xff]
      %v1603 = vld [vmem:[%s1500 + $0x19] sm:$0xff]
      %v1604 = vld [vmem:[%s1500 + $0x21] sm:$0xff]
      %v1605 = vld [vmem:[%s1500 + $0x31] sm:$0xff]
      %v1606 = vld [vmem:[%s1500 + $0x39] sm:$0xff]
      %v1607 = vld [vmem:[%s1500 + $0x49] sm:$0xff]
      %v1608 = vld [vmem:[%s1500 + $0x51] sm:$0xff]
      %v1609 = vld [vmem:[%s1500 + $0x61] sm:$0xff]
      %v1610 = vld [vmem:[%s1500 + $0x69] sm:$0xff]
      %v1611 = vld [vmem:[%s1500 + $0x79] sm:$0xff]
      %v1612 = vld [vmem:[%s1500 + $0x81] sm:$0xff]
      %v1613 = vld [vmem:[%s1500 + $0x91] sm:$0xff]
      %v1614 = vld [vmem:[%s1500 + $0x99] sm:$0xff]
      %v1615 = vld [vmem:[%s1500 + $0xa9] sm:$0xff]
      %v1616 = vld [vmem:[%s1500 + $0xb1] sm:$0xff]
      %v1617 = vld [vmem:[%s1500 + $0xc1] sm:$0xff]
      %v1618 = vld [vmem:[%s1500 + $0xc9] sm:$0xff]
      %v1619 = vld [vmem:[%s1500 + $0xd9] sm:$0xff]
      %v1620 = vld [vmem:[%s1500 + $0xe1] sm:$0xff]
      %v1621 = vld [vmem:[%s1500 + $0xf1] sm:$0xff]
      %v1622 = vld [vmem:[%s1500 + $0xf9] sm:$0xff]
      %v1623 = vld [vmem:[%s1500 + $0x109] sm:$0xff]
      %v1624 = vld [vmem:[%s1500 + $0x111] sm:$0xff]
      %v1625 = vld [vmem:[%s1500 + $0x121] sm:$0xff]
      %v1626 = vld [vmem:[%s1500 + $0x129] sm:$0xff]
      %v1627 = vld [vmem:[%s1500 + $0x139] sm:$0xff]
      %v1628 = vld [vmem:[%s1500 + $0x141] sm:$0xff]
      %v1629 = vld [vmem:[%s1500 + $0x151] sm:$0xff]
      %v1630 = vld [vmem:[%s1500 + $0x159] sm:$0xff]
      %v1631 = vld [vmem:[%s1500 + $0x169] sm:$0xff]
      %v1632 = vld [vmem:[%s1500 + $0x171] sm:$0xff]
      %v1633 = vlaneseq
      %v1634 = vshrl.u32 %v1633, 7
      %v1635 = vsub.s32 1, %v1634
      %v1636 = vrot.slane %v892, %v1635
      %v1637 = vmul.f32 %v1601, %v1636
      %v1638 = vmul.f32 %v1602, %v1636
      %v1639 = vmul.f32 %v1603, %v1636
      %v1640 = vmul.f32 %v1604, %v1636
      %v1641 = vmul.f32 %v1605, %v1636
      %v1642 = vmul.f32 %v1606, %v1636
      %v1643 = vmul.f32 %v1607, %v1636
      %v1644 = vmul.f32 %v1608, %v1636
      %v1645 = vmul.f32 %v1609, %v1636
      %v1646 = vmul.f32 %v1610, %v1636
      %v1647 = vmul.f32 %v1611, %v1636
      %v1648 = vmul.f32 %v1612, %v1636
      %v1649 = vmul.f32 %v1613, %v1636
      %v1650 = vmul.f32 %v1614, %v1636
      %v1651 = vmul.f32 %v1615, %v1636
      %v1652 = vmul.f32 %v1616, %v1636
      %v1653 = vmul.f32 %v1617, %v1636
      %v1654 = vmul.f32 %v1618, %v1636
      %v1655 = vmul.f32 %v1619, %v1636
      %v1656 = vmul.f32 %v1620, %v1636
      %v1657 = vmul.f32 %v1621, %v1636
      %v1658 = vmul.f32 %v1622, %v1636
      %v1659 = vmul.f32 %v1623, %v1636
      %v1660 = vmul.f32 %v1624, %v1636
      %v1661 = vmul.f32 %v1625, %v1636
      %v1662 = vmul.f32 %v1626, %v1636
      %v1663 = vmul.f32 %v1627, %v1636
      %v1664 = vmul.f32 %v1628, %v1636
      %v1665 = vmul.f32 %v1629, %v1636
      %v1666 = vmul.f32 %v1630, %v1636
      %v1667 = vmul.f32 %v1631, %v1636
      %v1668 = vmul.f32 %v1632, %v1636
      %v1669 = vadd.f32 %v1569, %v1637
      %v1670 = vadd.f32 %v1570, %v1638
      %v1671 = vadd.f32 %v1571, %v1639
      %v1672 = vadd.f32 %v1572, %v1640
      %v1673 = vadd.f32 %v1573, %v1641
      %v1674 = vadd.f32 %v1574, %v1642
      %v1675 = vadd.f32 %v1575, %v1643
      %v1676 = vadd.f32 %v1576, %v1644
      %v1677 = vadd.f32 %v1577, %v1645
      %v1678 = vadd.f32 %v1578, %v1646
      %v1679 = vadd.f32 %v1579, %v1647
      %v1680 = vadd.f32 %v1580, %v1648
      %v1681 = vadd.f32 %v1581, %v1649
      %v1682 = vadd.f32 %v1582, %v1650
      %v1683 = vadd.f32 %v1583, %v1651
      %v1684 = vadd.f32 %v1584, %v1652
      %v1685 = vadd.f32 %v1585, %v1653
      %v1686 = vadd.f32 %v1586, %v1654
      %v1687 = vadd.f32 %v1587, %v1655
      %v1688 = vadd.f32 %v1588, %v1656
      %v1689 = vadd.f32 %v1589, %v1657
      %v1690 = vadd.f32 %v1590, %v1658
      %v1691 = vadd.f32 %v1591, %v1659
      %v1692 = vadd.f32 %v1592, %v1660
      %v1693 = vadd.f32 %v1593, %v1661
      %v1694 = vadd.f32 %v1594, %v1662
      %v1695 = vadd.f32 %v1595, %v1663
      %v1696 = vadd.f32 %v1596, %v1664
      %v1697 = vadd.f32 %v1597, %v1665
      %v1698 = vadd.f32 %v1598, %v1666
      %v1699 = vadd.f32 %v1599, %v1667
      %v1700 = vadd.f32 %v1600, %v1668
      %v1701 = vld [vmem:[%s1500 + $0x2] sm:$0xff]
      %v1702 = vld [vmem:[%s1500 + $0xa] sm:$0xff]
      %v1703 = vld [vmem:[%s1500 + $0x1a] sm:$0xff]
      %v1704 = vld [vmem:[%s1500 + $0x22] sm:$0xff]
      %v1705 = vld [vmem:[%s1500 + $0x32] sm:$0xff]
      %v1706 = vld [vmem:[%s1500 + $0x3a] sm:$0xff]
      %v1707 = vld [vmem:[%s1500 + $0x4a] sm:$0xff]
      %v1708 = vld [vmem:[%s1500 + $0x52] sm:$0xff]
      %v1709 = vld [vmem:[%s1500 + $0x62] sm:$0xff]
      %v1710 = vld [vmem:[%s1500 + $0x6a] sm:$0xff]
      %v1711 = vld [vmem:[%s1500 + $0x7a] sm:$0xff]
      %v1712 = vld [vmem:[%s1500 + $0x82] sm:$0xff]
      %v1713 = vld [vmem:[%s1500 + $0x92] sm:$0xff]
      %v1714 = vld [vmem:[%s1500 + $0x9a] sm:$0xff]
      %v1715 = vld [vmem:[%s1500 + $0xaa] sm:$0xff]
      %v1716 = vld [vmem:[%s1500 + $0xb2] sm:$0xff]
      %v1717 = vld [vmem:[%s1500 + $0xc2] sm:$0xff]
      %v1718 = vld [vmem:[%s1500 + $0xca] sm:$0xff]
      %v1719 = vld [vmem:[%s1500 + $0xda] sm:$0xff]
      %v1720 = vld [vmem:[%s1500 + $0xe2] sm:$0xff]
      %v1721 = vld [vmem:[%s1500 + $0xf2] sm:$0xff]
      %v1722 = vld [vmem:[%s1500 + $0xfa] sm:$0xff]
      %v1723 = vld [vmem:[%s1500 + $0x10a] sm:$0xff]
      %v1724 = vld [vmem:[%s1500 + $0x112] sm:$0xff]
      %v1725 = vld [vmem:[%s1500 + $0x122] sm:$0xff]
      %v1726 = vld [vmem:[%s1500 + $0x12a] sm:$0xff]
      %v1727 = vld [vmem:[%s1500 + $0x13a] sm:$0xff]
      %v1728 = vld [vmem:[%s1500 + $0x142] sm:$0xff]
      %v1729 = vld [vmem:[%s1500 + $0x152] sm:$0xff]
      %v1730 = vld [vmem:[%s1500 + $0x15a] sm:$0xff]
      %v1731 = vld [vmem:[%s1500 + $0x16a] sm:$0xff]
      %v1732 = vld [vmem:[%s1500 + $0x172] sm:$0xff]
      %v1733 = vlaneseq
      %v1734 = vshrl.u32 %v1733, 7
      %v1735 = vsub.s32 2, %v1734
      %v1736 = vrot.slane %v892, %v1735
      %v1737 = vmul.f32 %v1701, %v1736
      %v1738 = vmul.f32 %v1702, %v1736
      %v1739 = vmul.f32 %v1703, %v1736
      %v1740 = vmul.f32 %v1704, %v1736
      %v1741 = vmul.f32 %v1705, %v1736
      %v1742 = vmul.f32 %v1706, %v1736
      %v1743 = vmul.f32 %v1707, %v1736
      %v1744 = vmul.f32 %v1708, %v1736
      %v1745 = vmul.f32 %v1709, %v1736
      %v1746 = vmul.f32 %v1710, %v1736
      %v1747 = vmul.f32 %v1711, %v1736
      %v1748 = vmul.f32 %v1712, %v1736
      %v1749 = vmul.f32 %v1713, %v1736
      %v1750 = vmul.f32 %v1714, %v1736
      %v1751 = vmul.f32 %v1715, %v1736
      %v1752 = vmul.f32 %v1716, %v1736
      %v1753 = vmul.f32 %v1717, %v1736
      %v1754 = vmul.f32 %v1718, %v1736
      %v1755 = vmul.f32 %v1719, %v1736
      %v1756 = vmul.f32 %v1720, %v1736
      %v1757 = vmul.f32 %v1721, %v1736
      %v1758 = vmul.f32 %v1722, %v1736
      %v1759 = vmul.f32 %v1723, %v1736
      %v1760 = vmul.f32 %v1724, %v1736
      %v1761 = vmul.f32 %v1725, %v1736
      %v1762 = vmul.f32 %v1726, %v1736
      %v1763 = vmul.f32 %v1727, %v1736
      %v1764 = vmul.f32 %v1728, %v1736
      %v1765 = vmul.f32 %v1729, %v1736
      %v1766 = vmul.f32 %v1730, %v1736
      %v1767 = vmul.f32 %v1731, %v1736
      %v1768 = vmul.f32 %v1732, %v1736
      %v1769 = vadd.f32 %v1669, %v1737
      %v1770 = vadd.f32 %v1670, %v1738
      %v1771 = vadd.f32 %v1671, %v1739
      %v1772 = vadd.f32 %v1672, %v1740
      %v1773 = vadd.f32 %v1673, %v1741
      %v1774 = vadd.f32 %v1674, %v1742
      %v1775 = vadd.f32 %v1675, %v1743
      %v1776 = vadd.f32 %v1676, %v1744
      %v1777 = vadd.f32 %v1677, %v1745
      %v1778 = vadd.f32 %v1678, %v1746
      %v1779 = vadd.f32 %v1679, %v1747
      %v1780 = vadd.f32 %v1680, %v1748
      %v1781 = vadd.f32 %v1681, %v1749
      %v1782 = vadd.f32 %v1682, %v1750
      %v1783 = vadd.f32 %v1683, %v1751
      %v1784 = vadd.f32 %v1684, %v1752
      %v1785 = vadd.f32 %v1685, %v1753
      %v1786 = vadd.f32 %v1686, %v1754
      %v1787 = vadd.f32 %v1687, %v1755
      %v1788 = vadd.f32 %v1688, %v1756
      %v1789 = vadd.f32 %v1689, %v1757
      %v1790 = vadd.f32 %v1690, %v1758
      %v1791 = vadd.f32 %v1691, %v1759
      %v1792 = vadd.f32 %v1692, %v1760
      %v1793 = vadd.f32 %v1693, %v1761
      %v1794 = vadd.f32 %v1694, %v1762
      %v1795 = vadd.f32 %v1695, %v1763
      %v1796 = vadd.f32 %v1696, %v1764
      %v1797 = vadd.f32 %v1697, %v1765
      %v1798 = vadd.f32 %v1698, %v1766
      %v1799 = vadd.f32 %v1699, %v1767
      %v1800 = vadd.f32 %v1700, %v1768
      %v1801 = vmax.f32 %v1769, 0.0
      %v1802 = vmax.f32 %v1770, 0.0
      %v1803 = vmax.f32 %v1771, 0.0
      %v1804 = vmax.f32 %v1772, 0.0
      %v1805 = vmax.f32 %v1773, 0.0
      %v1806 = vmax.f32 %v1774, 0.0
      %v1807 = vmax.f32 %v1775, 0.0
      %v1808 = vmax.f32 %v1776, 0.0
      %v1809 = vmax.f32 %v1777, 0.0
      %v1810 = vmax.f32 %v1778, 0.0
      %v1811 = vmax.f32 %v1779, 0.0
      %v1812 = vmax.f32 %v1780, 0.0
      %v1813 = vmax.f32 %v1781, 0.0
      %v1814 = vmax.f32 %v1782, 0.0
      %v1815 = vmax.f32 %v1783, 0.0
      %v1816 = vmax.f32 %v1784, 0.0
      %v1817 = vmax.f32 %v1785, 0.0
      %v1818 = vmax.f32 %v1786, 0.0
      %v1819 = vmax.f32 %v1787, 0.0
      %v1820 = vmax.f32 %v1788, 0.0
      %v1821 = vmax.f32 %v1789, 0.0
      %v1822 = vmax.f32 %v1790, 0.0
      %v1823 = vmax.f32 %v1791, 0.0
      %v1824 = vmax.f32 %v1792, 0.0
      %v1825 = vmax.f32 %v1793, 0.0
      %v1826 = vmax.f32 %v1794, 0.0
      %v1827 = vmax.f32 %v1795, 0.0
      %v1828 = vmax.f32 %v1796, 0.0
      %v1829 = vmax.f32 %v1797, 0.0
      %v1830 = vmax.f32 %v1798, 0.0
      %v1831 = vmax.f32 %v1799, 0.0
      %v1832 = vmax.f32 %v1800, 0.0
      %v1833 = vmin.f32 %v1801, 6.0
      %v1834 = vmin.f32 %v1802, 6.0
      %v1835 = vmin.f32 %v1803, 6.0
      %v1836 = vmin.f32 %v1804, 6.0
      %v1837 = vmin.f32 %v1805, 6.0
      %v1838 = vmin.f32 %v1806, 6.0
      %v1839 = vmin.f32 %v1807, 6.0
      %v1840 = vmin.f32 %v1808, 6.0
      %v1841 = vmin.f32 %v1809, 6.0
      %v1842 = vmin.f32 %v1810, 6.0
      %v1843 = vmin.f32 %v1811, 6.0
      %v1844 = vmin.f32 %v1812, 6.0
      %v1845 = vmin.f32 %v1813, 6.0
      %v1846 = vmin.f32 %v1814, 6.0
      %v1847 = vmin.f32 %v1815, 6.0
      %v1848 = vmin.f32 %v1816, 6.0
      %v1849 = vmin.f32 %v1817, 6.0
      %v1850 = vmin.f32 %v1818, 6.0
      %v1851 = vmin.f32 %v1819, 6.0
      %v1852 = vmin.f32 %v1820, 6.0
      %v1853 = vmin.f32 %v1821, 6.0
      %v1854 = vmin.f32 %v1822, 6.0
      %v1855 = vmin.f32 %v1823, 6.0
      %v1856 = vmin.f32 %v1824, 6.0
      %v1857 = vmin.f32 %v1825, 6.0
      %v1858 = vmin.f32 %v1826, 6.0
      %v1859 = vmin.f32 %v1827, 6.0
      %v1860 = vmin.f32 %v1828, 6.0
      %v1861 = vmin.f32 %v1829, 6.0
      %v1862 = vmin.f32 %v1830, 6.0
      %v1863 = vmin.f32 %v1831, 6.0
      %v1864 = vmin.f32 %v1832, 6.0
      %v1865 = vld [vmem:[%s368] sm:$0xff]
      %v1866 = vld [vmem:[%s368 + $0x8] sm:$0xff]
      %v1867 = vld [vmem:[%s368 + $0x10] sm:$0xff]
      %v1868 = vld [vmem:[%s368 + $0x18] sm:$0xff]
      %v1869 = vld [vmem:[%s368 + $0x20] sm:$0xff]
      %v1870 = vld [vmem:[%s368 + $0x28] sm:$0xff]
      %v1872 = vsel %vm375, %v1833, 0
      %v1875 = vsel %vm375, %v1834, 0
      %v1878 = vsel %vm375, %v1835, 0
      %v1881 = vsel %vm375, %v1836, 0
      %v1884 = vsel %vm375, %v1837, 0
      %v1887 = vsel %vm375, %v1838, 0
      %v1890 = vsel %vm375, %v1839, 0
      %v1893 = vsel %vm375, %v1840, 0
      %v1896 = vsel %vm375, %v1841, 0
      %v1899 = vsel %vm375, %v1842, 0
      %v1902 = vsel %vm375, %v1843, 0
      %v1905 = vsel %vm375, %v1844, 0
      %v1908 = vsel %vm375, %v1845, 0
      %v1911 = vsel %vm375, %v1846, 0
      %v1914 = vsel %vm375, %v1847, 0
      %v1917 = vsel %vm375, %v1848, 0
      %v1920 = vsel %vm375, %v1849, 0
      %v1923 = vsel %vm375, %v1850, 0
      %v1926 = vsel %vm375, %v1851, 0
      %v1929 = vsel %vm375, %v1852, 0
      %v1932 = vsel %vm375, %v1853, 0
      %v1935 = vsel %vm375, %v1854, 0
      %v1938 = vsel %vm375, %v1855, 0
      %v1941 = vsel %vm375, %v1856, 0
      %v1944 = vsel %vm375, %v1857, 0
      %v1947 = vsel %vm375, %v1858, 0
      %v1950 = vsel %vm375, %v1859, 0
      %v1953 = vsel %vm375, %v1860, 0
      %v1956 = vsel %vm375, %v1861, 0
      %v1959 = vsel %vm375, %v1862, 0
      %v1962 = vsel %vm375, %v1863, 0
      %v1965 = vsel %vm375, %v1864, 0
      %1967 = vmatprep.subr.mxu0 0.0
      %1968 = vmatpush1.msra.mxu0 %v1865
      %1969 = vmatprep.subr.mxu0 0.0
      %1970 = vmatpush1.msra.mxu0 %v1866
      %1971 = vmatprep.subr.mxu0 0.0
      %1972 = vmatpush1.msra.mxu0 %v1867
      %1973 = vmatprep.subr.mxu0 0.0
      %1974 = vmatpush1.msra.mxu0 %v1868
      %1975 = vmatprep.subr.mxu0 0.0
      %1976 = vmatpush1.msra.mxu0 %v1869
      %1977 = vmatprep.subr.mxu0 0.0
      %1978 = vmatpush1.msra.mxu0 %v1870
      %1979 = vmatprep.subr.mxu0 0.0
      %1980 = vmatpush1.msra.mxu0 0.0
      %1981 = vmatprep.subr.mxu0 0.0
      %1982 = vmatpush1.msra.mxu0 0.0
      %1983 = vmatprep.subr.mxu0 0.0
      %1984 = vmatpush1.msra.mxu0 0.0
      %1985 = vmatprep.subr.mxu0 0.0
      %1986 = vmatpush1.msra.mxu0 0.0
      %1987 = vmatprep.subr.mxu0 0.0
      %1988 = vmatpush1.msra.mxu0 0.0
      %1989 = vmatprep.subr.mxu0 0.0
      %1990 = vmatpush1.msra.mxu0 0.0
      %1991 = vmatprep.subr.mxu0 0.0
      %1992 = vmatpush1.msra.mxu0 0.0
      %1993 = vmatprep.subr.mxu0 0.0
      %1994 = vmatpush1.msra.mxu0 0.0
      %1995 = vmatprep.subr.mxu0 0.0
      %1996 = vmatpush1.msra.mxu0 0.0
      %1997 = vmatprep.subr.mxu0 0.0
      %1998 = vmatpush1.msra.mxu0 0.0
      %1999 = vmatprep.subr.mxu0 0.0
      %2000 = vmatpush1.msra.mxu0 0.0
      %2001 = vmatprep.subr.mxu0 0.0
      %2002 = vmatpush1.msra.mxu0 0.0
      %2003 = vmatprep.subr.mxu0 0.0
      %2004 = vmatpush1.msra.mxu0 0.0
      %2005 = vmatprep.subr.mxu0 0.0
      %2006 = vmatpush1.msra.mxu0 0.0
      %2007 = vmatprep.subr.mxu0 0.0
      %2008 = vmatpush1.msra.mxu0 0.0
      %2009 = vmatprep.subr.mxu0 0.0
      %2010 = vmatpush1.msra.mxu0 0.0
      %2011 = vmatprep.subr.mxu0 0.0
      %2012 = vmatpush1.msra.mxu0 0.0
      %2013 = vmatprep.subr.mxu0 0.0
      %2014 = vmatpush1.msra.mxu0 0.0
      %2015 = vmatprep.subr.mxu0 0.0
      %2016 = vmatpush1.msra.mxu0 0.0
      %2017 = vmatprep.subr.mxu0 0.0
      %2018 = vmatpush1.msra.mxu0 0.0
      %2019 = vmatprep.subr.mxu0 0.0
      %2020 = vmatpush1.msra.mxu0 0.0
      %2021 = vmatprep.subr.mxu0 0.0
      %2022 = vmatpush1.msra.mxu0 0.0
      %2023 = vmatprep.subr.mxu0 0.0
      %2024 = vmatpush1.msra.mxu0 0.0
      %2025 = vmatprep.subr.mxu0 0.0
      %2026 = vmatpush1.msra.mxu0 0.0
      %2027 = vmatprep.subr.mxu0 0.0
      %2028 = vmatpush1.msra.mxu0 0.0
      %2029 = vmatprep.subr.mxu0 0.0
      %2030 = vmatpush1.msra.mxu0 0.0
      %2031 = vmatprep.mubr.f32.mxu0 0.0
      %2032 = vmatmul.mubr.f32.gmra.mrb[0].mxu0 %v1872
      %v2033 = vpop.f32.mrb[0].mxu0
      %v2034 = vadd.f32 0.0, %v2033
      %v2035 = vpop.f32.mrb[0].mxu0
      %2036 = vmatprep.mubr.f32.mxu0 0.0
      %2037 = vmatmul.mubr.f32.gmra.mrb[0].mxu0 %v1875
      %v2038 = vpop.f32.mrb[0].mxu0
      %v2039 = vadd.f32 0.0, %v2038
      %v2040 = vpop.f32.mrb[0].mxu0
      %2041 = vmatprep.mubr.f32.mxu0 0.0
      %2042 = vmatmul.mubr.f32.gmra.mrb[0].mxu0 %v1878
      %v2043 = vpop.f32.mrb[0].mxu0
      %v2044 = vadd.f32 0.0, %v2043
      %v2045 = vpop.f32.mrb[0].mxu0
      %2046 = vmatprep.mubr.f32.mxu0 0.0
      %2047 = vmatmul.mubr.f32.gmra.mrb[0].mxu0 %v1881
      %v2048 = vpop.f32.mrb[0].mxu0
      %v2049 = vadd.f32 0.0, %v2048
      %v2050 = vpop.f32.mrb[0].mxu0
      %2051 = vmatprep.mubr.f32.mxu0 0.0
      %2052 = vmatmul.mubr.f32.gmra.mrb[0].mxu0 %v1884
      %v2053 = vpop.f32.mrb[0].mxu0
      %v2054 = vadd.f32 0.0, %v2053
      %v2055 = vpop.f32.mrb[0].mxu0
      %2056 = vmatprep.mubr.f32.mxu0 0.0
      %2057 = vmatmul.mubr.f32.gmra.mrb[0].mxu0 %v1887
      %v2058 = vpop.f32.mrb[0].mxu0
      %v2059 = vadd.f32 0.0, %v2058
      %v2060 = vpop.f32.mrb[0].mxu0
      %2061 = vmatprep.mubr.f32.mxu0 0.0
      %2062 = vmatmul.mubr.f32.gmra.mrb[0].mxu0 %v1890
      %v2063 = vpop.f32.mrb[0].mxu0
      %v2064 = vadd.f32 0.0, %v2063
      %v2065 = vpop.f32.mrb[0].mxu0
      %2066 = vmatprep.mubr.f32.mxu0 0.0
      %2067 = vmatmul.mubr.f32.gmra.mrb[0].mxu0 %v1893
      %v2068 = vpop.f32.mrb[0].mxu0
      %v2069 = vadd.f32 0.0, %v2068
      %v2070 = vpop.f32.mrb[0].mxu0
      %2071 = vmatprep.mubr.f32.mxu0 0.0
      %2072 = vmatmul.mubr.f32.gmra.mrb[0].mxu0 %v1896
      %v2073 = vpop.f32.mrb[0].mxu0
      %v2074 = vadd.f32 0.0, %v2073
      %v2075 = vpop.f32.mrb[0].mxu0
      %2076 = vmatprep.mubr.f32.mxu0 0.0
      %2077 = vmatmul.mubr.f32.gmra.mrb[0].mxu0 %v1899
      %v2078 = vpop.f32.mrb[0].mxu0
      %v2079 = vadd.f32 0.0, %v2078
      %v2080 = vpop.f32.mrb[0].mxu0
      %2081 = vmatprep.mubr.f32.mxu0 0.0
      %2082 = vmatmul.mubr.f32.gmra.mrb[0].mxu0 %v1902
      %v2083 = vpop.f32.mrb[0].mxu0
      %v2084 = vadd.f32 0.0, %v2083
      %v2085 = vpop.f32.mrb[0].mxu0
      %2086 = vmatprep.mubr.f32.mxu0 0.0
      %2087 = vmatmul.mubr.f32.gmra.mrb[0].mxu0 %v1905
      %v2088 = vpop.f32.mrb[0].mxu0
      %v2089 = vadd.f32 0.0, %v2088
      %v2090 = vpop.f32.mrb[0].mxu0
      %2091 = vmatprep.mubr.f32.mxu0 0.0
      %2092 = vmatmul.mubr.f32.gmra.mrb[0].mxu0 %v1908
      %v2093 = vpop.f32.mrb[0].mxu0
      %v2094 = vadd.f32 0.0, %v2093
      %v2095 = vpop.f32.mrb[0].mxu0
      %2096 = vmatprep.mubr.f32.mxu0 0.0
      %2097 = vmatmul.mubr.f32.gmra.mrb[0].mxu0 %v1911
      %v2098 = vpop.f32.mrb[0].mxu0
      %v2099 = vadd.f32 0.0, %v2098
      %v2100 = vpop.f32.mrb[0].mxu0
      %2101 = vmatprep.mubr.f32.mxu0 0.0
      %2102 = vmatmul.mubr.f32.gmra.mrb[0].mxu0 %v1914
      %v2103 = vpop.f32.mrb[0].mxu0
      %v2104 = vadd.f32 0.0, %v2103
      %v2105 = vpop.f32.mrb[0].mxu0
      %2106 = vmatprep.mubr.f32.mxu0 0.0
      %2107 = vmatmul.mubr.f32.gmra.mrb[0].mxu0 %v1917
      %v2108 = vpop.f32.mrb[0].mxu0
      %v2109 = vadd.f32 0.0, %v2108
      %v2110 = vpop.f32.mrb[0].mxu0
      %2111 = vmatprep.mubr.f32.mxu0 0.0
      %2112 = vmatmul.mubr.f32.gmra.mrb[0].mxu0 %v1920
      %v2113 = vpop.f32.mrb[0].mxu0
      %v2114 = vadd.f32 0.0, %v2113
      %v2115 = vpop.f32.mrb[0].mxu0
      %2116 = vmatprep.mubr.f32.mxu0 0.0
      %2117 = vmatmul.mubr.f32.gmra.mrb[0].mxu0 %v1923
      %v2118 = vpop.f32.mrb[0].mxu0
      %v2119 = vadd.f32 0.0, %v2118
      %v2120 = vpop.f32.mrb[0].mxu0
      %2121 = vmatprep.mubr.f32.mxu0 0.0
      %2122 = vmatmul.mubr.f32.gmra.mrb[0].mxu0 %v1926
      %v2123 = vpop.f32.mrb[0].mxu0
      %v2124 = vadd.f32 0.0, %v2123
      %v2125 = vpop.f32.mrb[0].mxu0
      %2126 = vmatprep.mubr.f32.mxu0 0.0
      %2127 = vmatmul.mubr.f32.gmra.mrb[0].mxu0 %v1929
      %v2128 = vpop.f32.mrb[0].mxu0
      %v2129 = vadd.f32 0.0, %v2128
      %v2130 = vpop.f32.mrb[0].mxu0
      %2131 = vmatprep.mubr.f32.mxu0 0.0
      %2132 = vmatmul.mubr.f32.gmra.mrb[0].mxu0 %v1932
      %v2133 = vpop.f32.mrb[0].mxu0
      %v2134 = vadd.f32 0.0, %v2133
      %v2135 = vpop.f32.mrb[0].mxu0
      %2136 = vmatprep.mubr.f32.mxu0 0.0
      %2137 = vmatmul.mubr.f32.gmra.mrb[0].mxu0 %v1935
      %v2138 = vpop.f32.mrb[0].mxu0
      %v2139 = vadd.f32 0.0, %v2138
      %v2140 = vpop.f32.mrb[0].mxu0
      %2141 = vmatprep.mubr.f32.mxu0 0.0
      %2142 = vmatmul.mubr.f32.gmra.mrb[0].mxu0 %v1938
      %v2143 = vpop.f32.mrb[0].mxu0
      %v2144 = vadd.f32 0.0, %v2143
      %v2145 = vpop.f32.mrb[0].mxu0
      %2146 = vmatprep.mubr.f32.mxu0 0.0
      %2147 = vmatmul.mubr.f32.gmra.mrb[0].mxu0 %v1941
      %v2148 = vpop.f32.mrb[0].mxu0
      %v2149 = vadd.f32 0.0, %v2148
      %v2150 = vpop.f32.mrb[0].mxu0
      %2151 = vmatprep.mubr.f32.mxu0 0.0
      %2152 = vmatmul.mubr.f32.gmra.mrb[0].mxu0 %v1944
      %v2153 = vpop.f32.mrb[0].mxu0
      %v2154 = vadd.f32 0.0, %v2153
      %v2155 = vpop.f32.mrb[0].mxu0
      %2156 = vmatprep.mubr.f32.mxu0 0.0
      %2157 = vmatmul.mubr.f32.gmra.mrb[0].mxu0 %v1947
      %v2158 = vpop.f32.mrb[0].mxu0
      %v2159 = vadd.f32 0.0, %v2158
      %v2160 = vpop.f32.mrb[0].mxu0
      %2161 = vmatprep.mubr.f32.mxu0 0.0
      %2162 = vmatmul.mubr.f32.gmra.mrb[0].mxu0 %v1950
      %v2163 = vpop.f32.mrb[0].mxu0
      %v2164 = vadd.f32 0.0, %v2163
      %v2165 = vpop.f32.mrb[0].mxu0
      %2166 = vmatprep.mubr.f32.mxu0 0.0
      %2167 = vmatmul.mubr.f32.gmra.mrb[0].mxu0 %v1953
      %v2168 = vpop.f32.mrb[0].mxu0
      %v2169 = vadd.f32 0.0, %v2168
      %v2170 = vpop.f32.mrb[0].mxu0
      %2171 = vmatprep.mubr.f32.mxu0 0.0
      %2172 = vmatmul.mubr.f32.gmra.mrb[0].mxu0 %v1956
      %v2173 = vpop.f32.mrb[0].mxu0
      %v2174 = vadd.f32 0.0, %v2173
      %v2175 = vpop.f32.mrb[0].mxu0
      %2176 = vmatprep.mubr.f32.mxu0 0.0
      %2177 = vmatmul.mubr.f32.gmra.mrb[0].mxu0 %v1959
      %v2178 = vpop.f32.mrb[0].mxu0
      %v2179 = vadd.f32 0.0, %v2178
      %v2180 = vpop.f32.mrb[0].mxu0
      %2181 = vmatprep.mubr.f32.mxu0 0.0
      %2182 = vmatmul.mubr.f32.gmra.mrb[0].mxu0 %v1962
      %v2183 = vpop.f32.mrb[0].mxu0
      %v2184 = vadd.f32 0.0, %v2183
      %v2185 = vpop.f32.mrb[0].mxu0
      %2186 = vmatprep.mubr.f32.mxu0 0.0
      %2187 = vmatmul.mubr.f32.gmra.mrb[0].mxu0 %v1965
      %v2188 = vpop.f32.mrb[0].mxu0
      %v2189 = vadd.f32 0.0, %v2188
      %v2190 = vpop.f32.mrb[0].mxu0
      %2191 = vdwg.mxu0
      %p2192 = scmp.eq.s32.totalorder %s23, 0
      // Predicated region
      $region49: #{tpu_custom_call.1} parent=47 // pred_check
        %p2193 = pneg %p2192
      $region50: #{tpu_custom_call.1} parent=47 // pred_check_branch
        %2195 = sbr.rel (%p2193) target = $region52
      $region51: #{tpu_custom_call.1} parent=47 // pred_region
        %v2196 = vld [vmem:[%s6] sm:$0x1]
        %v2198 = vlaneseq
        %v2199 = vshrl.u32 %v2198, 7
        %v2200 = vsub.s32 0, %v2199
        %v2201 = vrot.slane %v2196, %v2200
        %v2203 = vadd.f32 %v2201, %v431
        %v2204 = vadd.f32 %v2201, %v432
        %v2205 = vadd.f32 %v2201, %v433
        %v2206 = vadd.f32 %v2201, %v434
        %v2207 = vadd.f32 %v2201, %v435
        %v2208 = vadd.f32 %v2201, %v436
        %v2209 = vadd.f32 %v2201, %v437
        %v2210 = vadd.f32 %v2201, %v438
        %v2211 = vadd.f32 %v2201, %v439
        %v2212 = vadd.f32 %v2201, %v440
        %v2213 = vadd.f32 %v2201, %v441
        %v2214 = vadd.f32 %v2201, %v442
        %v2215 = vadd.f32 %v2201, %v443
        %v2216 = vadd.f32 %v2201, %v444
        %v2217 = vadd.f32 %v2201, %v445
        %v2218 = vadd.f32 %v2201, %v446
        %v2219 = vadd.f32 %v2201, %v447
        %v2220 = vadd.f32 %v2201, %v448
        %v2221 = vadd.f32 %v2201, %v449
        %v2222 = vadd.f32 %v2201, %v450
        %v2223 = vadd.f32 %v2201, %v451
        %v2224 = vadd.f32 %v2201, %v452
        %v2225 = vadd.f32 %v2201, %v453
        %v2226 = vadd.f32 %v2201, %v454
        %v2227 = vadd.f32 %v2201, %v455
        %v2228 = vadd.f32 %v2201, %v456
        %v2229 = vadd.f32 %v2201, %v457
        %v2230 = vadd.f32 %v2201, %v458
        %v2231 = vadd.f32 %v2201, %v459
        %v2232 = vadd.f32 %v2201, %v460
        %v2233 = vadd.f32 %v2201, %v461
        %v2234 = vadd.f32 %v2201, %v462
        %2235 = vst.msk [vmem:[#allocation3] sm:$0xff] %vm471, %v2203
        %2236 = vst.msk [vmem:[#allocation3 + $0x8] sm:$0xff] %vm471, %v2204
        %2237 = vst.msk [vmem:[#allocation3 + $0x10] sm:$0xff] %vm471, %v2205
        %2238 = vst.msk [vmem:[#allocation3 + $0x18] sm:$0xff] %vm471, %v2206
        %2239 = vst.msk [vmem:[#allocation3 + $0x20] sm:$0xff] %vm471, %v2207
        %2240 = vst.msk [vmem:[#allocation3 + $0x28] sm:$0xff] %vm471, %v2208
        %2241 = vst.msk [vmem:[#allocation3 + $0x30] sm:$0xff] %vm471, %v2209
        %2242 = vst.msk [vmem:[#allocation3 + $0x38] sm:$0xff] %vm471, %v2210
        %2243 = vst.msk [vmem:[#allocation3 + $0x40] sm:$0xff] %vm471, %v2211
        %2244 = vst.msk [vmem:[#allocation3 + $0x48] sm:$0xff] %vm471, %v2212
        %2245 = vst.msk [vmem:[#allocation3 + $0x50] sm:$0xff] %vm471, %v2213
        %2246 = vst.msk [vmem:[#allocation3 + $0x58] sm:$0xff] %vm471, %v2214
        %2247 = vst.msk [vmem:[#allocation3 + $0x60] sm:$0xff] %vm471, %v2215
        %2248 = vst.msk [vmem:[#allocation3 + $0x68] sm:$0xff] %vm471, %v2216
        %2249 = vst.msk [vmem:[#allocation3 + $0x70] sm:$0xff] %vm471, %v2217
        %2250 = vst.msk [vmem:[#allocation3 + $0x78] sm:$0xff] %vm471, %v2218
        %2251 = vst.msk [vmem:[#allocation3 + $0x80] sm:$0xff] %vm471, %v2219
        %2252 = vst.msk [vmem:[#allocation3 + $0x88] sm:$0xff] %vm471, %v2220
        %2253 = vst.msk [vmem:[#allocation3 + $0x90] sm:$0xff] %vm471, %v2221
        %2254 = vst.msk [vmem:[#allocation3 + $0x98] sm:$0xff] %vm471, %v2222
        %2255 = vst.msk [vmem:[#allocation3 + $0xa0] sm:$0xff] %vm471, %v2223
        %2256 = vst.msk [vmem:[#allocation3 + $0xa8] sm:$0xff] %vm471, %v2224
        %2257 = vst.msk [vmem:[#allocation3 + $0xb0] sm:$0xff] %vm471, %v2225
        %2258 = vst.msk [vmem:[#allocation3 + $0xb8] sm:$0xff] %vm471, %v2226
        %2259 = vst.msk [vmem:[#allocation3 + $0xc0] sm:$0xff] %vm471, %v2227
        %2260 = vst.msk [vmem:[#allocation3 + $0xc8] sm:$0xff] %vm471, %v2228
        %2261 = vst.msk [vmem:[#allocation3 + $0xd0] sm:$0xff] %vm471, %v2229
        %2262 = vst.msk [vmem:[#allocation3 + $0xd8] sm:$0xff] %vm471, %v2230
        %2263 = vst.msk [vmem:[#allocation3 + $0xe0] sm:$0xff] %vm471, %v2231
        %2264 = vst.msk [vmem:[#allocation3 + $0xe8] sm:$0xff] %vm471, %v2232
        %2265 = vst.msk [vmem:[#allocation3 + $0xf0] sm:$0xff] %vm471, %v2233
        %2266 = vst.msk [vmem:[#allocation3 + $0xf8] sm:$0xff] %vm471, %v2234
      $region52: #{tpu_custom_call.1} parent=47 // pred_fallthru
        _
      %v2267 = vld [vmem:[#allocation3] sm:$0xff]
      %v2268 = vld [vmem:[#allocation3 + $0x8] sm:$0xff]
      %v2269 = vld [vmem:[#allocation3 + $0x10] sm:$0xff]
      %v2270 = vld [vmem:[#allocation3 + $0x18] sm:$0xff]
      %v2271 = vld [vmem:[#allocation3 + $0x20] sm:$0xff]
      %v2272 = vld [vmem:[#allocation3 + $0x28] sm:$0xff]
      %v2273 = vld [vmem:[#allocation3 + $0x30] sm:$0xff]
      %v2274 = vld [vmem:[#allocation3 + $0x38] sm:$0xff]
      %v2275 = vld [vmem:[#allocation3 + $0x40] sm:$0xff]
      %v2276 = vld [vmem:[#allocation3 + $0x48] sm:$0xff]
      %v2277 = vld [vmem:[#allocation3 + $0x50] sm:$0xff]
      %v2278 = vld [vmem:[#allocation3 + $0x58] sm:$0xff]
      %v2279 = vld [vmem:[#allocation3 + $0x60] sm:$0xff]
      %v2280 = vld [vmem:[#allocation3 + $0x68] sm:$0xff]
      %v2281 = vld [vmem:[#allocation3 + $0x70] sm:$0xff]
      %v2282 = vld [vmem:[#allocation3 + $0x78] sm:$0xff]
      %v2283 = vld [vmem:[#allocation3 + $0x80] sm:$0xff]
      %v2284 = vld [vmem:[#allocation3 + $0x88] sm:$0xff]
      %v2285 = vld [vmem:[#allocation3 + $0x90] sm:$0xff]
      %v2286 = vld [vmem:[#allocation3 + $0x98] sm:$0xff]
      %v2287 = vld [vmem:[#allocation3 + $0xa0] sm:$0xff]
      %v2288 = vld [vmem:[#allocation3 + $0xa8] sm:$0xff]
      %v2289 = vld [vmem:[#allocation3 + $0xb0] sm:$0xff]
      %v2290 = vld [vmem:[#allocation3 + $0xb8] sm:$0xff]
      %v2291 = vld [vmem:[#allocation3 + $0xc0] sm:$0xff]
      %v2292 = vld [vmem:[#allocation3 + $0xc8] sm:$0xff]
      %v2293 = vld [vmem:[#allocation3 + $0xd0] sm:$0xff]
      %v2294 = vld [vmem:[#allocation3 + $0xd8] sm:$0xff]
      %v2295 = vld [vmem:[#allocation3 + $0xe0] sm:$0xff]
      %v2296 = vld [vmem:[#allocation3 + $0xe8] sm:$0xff]
      %v2297 = vld [vmem:[#allocation3 + $0xf0] sm:$0xff]
      %v2298 = vld [vmem:[#allocation3 + $0xf8] sm:$0xff]
      %v2299 = vadd.f32 %v2267, %v2034
      %v2300 = vadd.f32 %v2268, %v2039
      %v2301 = vadd.f32 %v2269, %v2044
      %v2302 = vadd.f32 %v2270, %v2049
      %v2303 = vadd.f32 %v2271, %v2054
      %v2304 = vadd.f32 %v2272, %v2059
      %v2305 = vadd.f32 %v2273, %v2064
      %v2306 = vadd.f32 %v2274, %v2069
      %v2307 = vadd.f32 %v2275, %v2074
      %v2308 = vadd.f32 %v2276, %v2079
      %v2309 = vadd.f32 %v2277, %v2084
      %v2310 = vadd.f32 %v2278, %v2089
      %v2311 = vadd.f32 %v2279, %v2094
      %v2312 = vadd.f32 %v2280, %v2099
      %v2313 = vadd.f32 %v2281, %v2104
      %v2314 = vadd.f32 %v2282, %v2109
      %v2315 = vadd.f32 %v2283, %v2114
      %v2316 = vadd.f32 %v2284, %v2119
      %v2317 = vadd.f32 %v2285, %v2124
      %v2318 = vadd.f32 %v2286, %v2129
      %v2319 = vadd.f32 %v2287, %v2134
      %v2320 = vadd.f32 %v2288, %v2139
      %v2321 = vadd.f32 %v2289, %v2144
      %v2322 = vadd.f32 %v2290, %v2149
      %v2323 = vadd.f32 %v2291, %v2154
      %v2324 = vadd.f32 %v2292, %v2159
      %v2325 = vadd.f32 %v2293, %v2164
      %v2326 = vadd.f32 %v2294, %v2169
      %v2327 = vadd.f32 %v2295, %v2174
      %v2328 = vadd.f32 %v2296, %v2179
      %v2329 = vadd.f32 %v2297, %v2184
      %v2330 = vadd.f32 %v2298, %v2189
      %2331 = vst.msk [vmem:[#allocation3] sm:$0xff] %vm471, %v2299
      %2332 = vst.msk [vmem:[#allocation3 + $0x8] sm:$0xff] %vm471, %v2300
      %2333 = vst.msk [vmem:[#allocation3 + $0x10] sm:$0xff] %vm471, %v2301
      %2334 = vst.msk [vmem:[#allocation3 + $0x18] sm:$0xff] %vm471, %v2302
      %2335 = vst.msk [vmem:[#allocation3 + $0x20] sm:$0xff] %vm471, %v2303
      %2336 = vst.msk [vmem:[#allocation3 + $0x28] sm:$0xff] %vm471, %v2304
      %2337 = vst.msk [vmem:[#allocation3 + $0x30] sm:$0xff] %vm471, %v2305
      %2338 = vst.msk [vmem:[#allocation3 + $0x38] sm:$0xff] %vm471, %v2306
      %2339 = vst.msk [vmem:[#allocation3 + $0x40] sm:$0xff] %vm471, %v2307
      %2340 = vst.msk [vmem:[#allocation3 + $0x48] sm:$0xff] %vm471, %v2308
      %2341 = vst.msk [vmem:[#allocation3 + $0x50] sm:$0xff] %vm471, %v2309
      %2342 = vst.msk [vmem:[#allocation3 + $0x58] sm:$0xff] %vm471, %v2310
      %2343 = vst.msk [vmem:[#allocation3 + $0x60] sm:$0xff] %vm471, %v2311
      %2344 = vst.msk [vmem:[#allocation3 + $0x68] sm:$0xff] %vm471, %v2312
      %2345 = vst.msk [vmem:[#allocation3 + $0x70] sm:$0xff] %vm471, %v2313
      %2346 = vst.msk [vmem:[#allocation3 + $0x78] sm:$0xff] %vm471, %v2314
      %2347 = vst.msk [vmem:[#allocation3 + $0x80] sm:$0xff] %vm471, %v2315
      %2348 = vst.msk [vmem:[#allocation3 + $0x88] sm:$0xff] %vm471, %v2316
      %2349 = vst.msk [vmem:[#allocation3 + $0x90] sm:$0xff] %vm471, %v2317
      %2350 = vst.msk [vmem:[#allocation3 + $0x98] sm:$0xff] %vm471, %v2318
      %2351 = vst.msk [vmem:[#allocation3 + $0xa0] sm:$0xff] %vm471, %v2319
      %2352 = vst.msk [vmem:[#allocation3 + $0xa8] sm:$0xff] %vm471, %v2320
      %2353 = vst.msk [vmem:[#allocation3 + $0xb0] sm:$0xff] %vm471, %v2321
      %2354 = vst.msk [vmem:[#allocation3 + $0xb8] sm:$0xff] %vm471, %v2322
      %2355 = vst.msk [vmem:[#allocation3 + $0xc0] sm:$0xff] %vm471, %v2323
      %2356 = vst.msk [vmem:[#allocation3 + $0xc8] sm:$0xff] %vm471, %v2324
      %2357 = vst.msk [vmem:[#allocation3 + $0xd0] sm:$0xff] %vm471, %v2325
      %2358 = vst.msk [vmem:[#allocation3 + $0xd8] sm:$0xff] %vm471, %v2326
      %2359 = vst.msk [vmem:[#allocation3 + $0xe0] sm:$0xff] %vm471, %v2327
      %2360 = vst.msk [vmem:[#allocation3 + $0xe8] sm:$0xff] %vm471, %v2328
      %2361 = vst.msk [vmem:[#allocation3 + $0xf0] sm:$0xff] %vm471, %v2329
      %2362 = vst.msk [vmem:[#allocation3 + $0xf8] sm:$0xff] %vm471, %v2330
      // Predicated region
      $region53: #{tpu_custom_call.1} parent=47 // pred_check
        %p2363 = pneg %p2192
      $region54: #{tpu_custom_call.1} parent=47 // pred_check_branch
        %2365 = sbr.rel (%p2363) target = $region56
      $region55: #{tpu_custom_call.1} parent=47 // pred_region
        %v2366 = vld [vmem:[#allocation3] sm:$0xff]
        %v2367 = vld [vmem:[#allocation3 + $0x8] sm:$0xff]
        %v2368 = vld [vmem:[#allocation3 + $0x10] sm:$0xff]
        %v2369 = vld [vmem:[#allocation3 + $0x18] sm:$0xff]
        %v2370 = vld [vmem:[#allocation3 + $0x20] sm:$0xff]
        %v2371 = vld [vmem:[#allocation3 + $0x28] sm:$0xff]
        %v2372 = vld [vmem:[#allocation3 + $0x30] sm:$0xff]
        %v2373 = vld [vmem:[#allocation3 + $0x38] sm:$0xff]
        %v2374 = vld [vmem:[#allocation3 + $0x40] sm:$0xff]
        %v2375 = vld [vmem:[#allocation3 + $0x48] sm:$0xff]
        %v2376 = vld [vmem:[#allocation3 + $0x50] sm:$0xff]
        %v2377 = vld [vmem:[#allocation3 + $0x58] sm:$0xff]
        %v2378 = vld [vmem:[#allocation3 + $0x60] sm:$0xff]
        %v2379 = vld [vmem:[#allocation3 + $0x68] sm:$0xff]
        %v2380 = vld [vmem:[#allocation3 + $0x70] sm:$0xff]
        %v2381 = vld [vmem:[#allocation3 + $0x78] sm:$0xff]
        %v2382 = vld [vmem:[#allocation3 + $0x80] sm:$0xff]
        %v2383 = vld [vmem:[#allocation3 + $0x88] sm:$0xff]
        %v2384 = vld [vmem:[#allocation3 + $0x90] sm:$0xff]
        %v2385 = vld [vmem:[#allocation3 + $0x98] sm:$0xff]
        %v2386 = vld [vmem:[#allocation3 + $0xa0] sm:$0xff]
        %v2387 = vld [vmem:[#allocation3 + $0xa8] sm:$0xff]
        %v2388 = vld [vmem:[#allocation3 + $0xb0] sm:$0xff]
        %v2389 = vld [vmem:[#allocation3 + $0xb8] sm:$0xff]
        %v2390 = vld [vmem:[#allocation3 + $0xc0] sm:$0xff]
        %v2391 = vld [vmem:[#allocation3 + $0xc8] sm:$0xff]
        %v2392 = vld [vmem:[#allocation3 + $0xd0] sm:$0xff]
        %v2393 = vld [vmem:[#allocation3 + $0xd8] sm:$0xff]
        %v2394 = vld [vmem:[#allocation3 + $0xe0] sm:$0xff]
        %v2395 = vld [vmem:[#allocation3 + $0xe8] sm:$0xff]
        %v2396 = vld [vmem:[#allocation3 + $0xf0] sm:$0xff]
        %v2397 = vld [vmem:[#allocation3 + $0xf8] sm:$0xff]
        %2398 = vst.msk [vmem:[%s374] sm:$0xff] %vm471, %v2366
        %2399 = vst.msk [vmem:[%s374 + $0x8] sm:$0xff] %vm471, %v2367
        %2400 = vst.msk [vmem:[%s374 + $0x10] sm:$0xff] %vm471, %v2368
        %2401 = vst.msk [vmem:[%s374 + $0x18] sm:$0xff] %vm471, %v2369
        %2402 = vst.msk [vmem:[%s374 + $0x20] sm:$0xff] %vm471, %v2370
        %2403 = vst.msk [vmem:[%s374 + $0x28] sm:$0xff] %vm471, %v2371
        %2404 = vst.msk [vmem:[%s374 + $0x30] sm:$0xff] %vm471, %v2372
        %2405 = vst.msk [vmem:[%s374 + $0x38] sm:$0xff] %vm471, %v2373
        %2406 = vst.msk [vmem:[%s374 + $0x40] sm:$0xff] %vm471, %v2374
        %2407 = vst.msk [vmem:[%s374 + $0x48] sm:$0xff] %vm471, %v2375
        %2408 = vst.msk [vmem:[%s374 + $0x50] sm:$0xff] %vm471, %v2376
        %2409 = vst.msk [vmem:[%s374 + $0x58] sm:$0xff] %vm471, %v2377
        %2410 = vst.msk [vmem:[%s374 + $0x60] sm:$0xff] %vm471, %v2378
        %2411 = vst.msk [vmem:[%s374 + $0x68] sm:$0xff] %vm471, %v2379
        %2412 = vst.msk [vmem:[%s374 + $0x70] sm:$0xff] %vm471, %v2380
        %2413 = vst.msk [vmem:[%s374 + $0x78] sm:$0xff] %vm471, %v2381
        %2414 = vst.msk [vmem:[%s374 + $0x80] sm:$0xff] %vm471, %v2382
        %2415 = vst.msk [vmem:[%s374 + $0x88] sm:$0xff] %vm471, %v2383
        %2416 = vst.msk [vmem:[%s374 + $0x90] sm:$0xff] %vm471, %v2384
        %2417 = vst.msk [vmem:[%s374 + $0x98] sm:$0xff] %vm471, %v2385
        %2418 = vst.msk [vmem:[%s374 + $0xa0] sm:$0xff] %vm471, %v2386
        %2419 = vst.msk [vmem:[%s374 + $0xa8] sm:$0xff] %vm471, %v2387
        %2420 = vst.msk [vmem:[%s374 + $0xb0] sm:$0xff] %vm471, %v2388
        %2421 = vst.msk [vmem:[%s374 + $0xb8] sm:$0xff] %vm471, %v2389
        %2422 = vst.msk [vmem:[%s374 + $0xc0] sm:$0xff] %vm471, %v2390
        %2423 = vst.msk [vmem:[%s374 + $0xc8] sm:$0xff] %vm471, %v2391
        %2424 = vst.msk [vmem:[%s374 + $0xd0] sm:$0xff] %vm471, %v2392
        %2425 = vst.msk [vmem:[%s374 + $0xd8] sm:$0xff] %vm471, %v2393
        %2426 = vst.msk [vmem:[%s374 + $0xe0] sm:$0xff] %vm471, %v2394
        %2427 = vst.msk [vmem:[%s374 + $0xe8] sm:$0xff] %vm471, %v2395
        %2428 = vst.msk [vmem:[%s374 + $0xf0] sm:$0xff] %vm471, %v2396
        %2429 = vst.msk [vmem:[%s374 + $0xf8] sm:$0xff] %vm471, %v2397
      $region56: #{tpu_custom_call.1} parent=47 // pred_fallthru
        _
      %p2430 = scmp.lt.s32.totalorder %s22, 1
      %s2431 = scalar_select %p2430, %s22, 1
      %s2432 = smul.addr %s2431, 32
      %s2433 = smul.addr %s2432, 8
      %s2434 = scalar_lea.vmem %s7, %s2433
      // Predicated region
      $region57: #{tpu_custom_call.1} parent=47 // pred_check
        %p2435 = pneg %p225
      $region58: #{tpu_custom_call.1} parent=47 // pred_check_branch
        %2437 = sbr.rel (%p2435) target = $region60
      $region59: #{tpu_custom_call.1} parent=47 // pred_region
        _
      $region60: #{tpu_custom_call.1} parent=47 // pred_fallthru
        _
    $region48: #{tpu_custom_call.1} parent=5 // pred_fallthru
      _
    %p2438 = scmp.le.s32.totalorder 2, %s13
    // Predicated region
    $region61: #{tpu_custom_call.1} parent=5 // pred_check
      %p2439 = pneg %p2438
    $region62: #{tpu_custom_call.1} parent=5 // pred_check_branch
      %2441 = sbr.rel (%p2439) target = $region64
    $region63: #{tpu_custom_call.1} parent=5 // pred_region
      %s2442 = ssub.s32 %s13, 2
      // Predicated region
      $region65: #{tpu_custom_call.1} parent=63 // pred_check
        %p2443 = pneg %p231
      $region66: #{tpu_custom_call.1} parent=63 // pred_check_branch
        %2445 = sbr.rel (%p2443) target = $region68
      $region67: #{tpu_custom_call.1} parent=63 // pred_region
        %p2446 = scmp.lt.s32.totalorder %s24, 1
        %s2447 = scalar_select %p2446, %s24, 1
        %s2448 = smul.addr %s2447, 32
        %s2449 = smul.addr %s2448, 8
        %s2450 = scalar_lea.vmem %s7, %s2449
      $region68: #{tpu_custom_call.1} parent=63 // pred_fallthru
        _
    $region64: #{tpu_custom_call.1} parent=5 // pred_fallthru
      _
  $region6: #{tpu_custom_call.1} parent=0 // loop_footer
    %s17 = sadd.s32 1, %s13
  $region7: #{tpu_custom_call.1} parent=0 // loop_footer_branch
    %12 = sbr.rel target = $region3
  $region8: #{tpu_custom_call.1} parent=0 // loop_exit
    _

</llo_original>
